<compile_context>
chip_gen: v6e
topology: v6e:2x2x1
jax: 0.10.0
libtpu: 0.0.40
codegen_flags: <defaults>
</compile_context>

<pallas_src>
import functools

import jax
import jax.numpy as jnp
from jax.experimental import pallas as pl
from jax.experimental.pallas import tpu as pltpu


# ------------------------------ tiling helpers ------------------------------

def _pick_tile(dim, preferred, align):
    """Largest tile <= `preferred` that divides `dim` and is `align`-aligned,
    falling back to the full dimension (a full-extent block is always legal)."""
    if dim <= preferred:
        return dim
    t = (preferred // align) * align
    while t >= align:
        if dim % t == 0:
            return t
        t -= align
    return dim


# --------------------------- fused / tiled linear ---------------------------

def _linear_kernel(x_ref, w_ref, b_ref, o_ref, acc_ref):
    """One (g, i, n, k) grid step of y[g] = x[g] @ w[g] + b[g].

    x_ref: (tm, tk), w_ref: (tk, tn), b_ref: (1, tn), o_ref: (tm, tn).
    acc_ref is a float32 VMEM accumulator that lives across the K grid axis.
    """
    k = pl.program_id(3)

    @pl.when(k == 0)
    def _init():
        acc_ref[...] = jnp.zeros(acc_ref.shape, acc_ref.dtype)

    acc_ref[...] += jnp.dot(x_ref[...], w_ref[...],
                            preferred_element_type=jnp.float32)

    @pl.when(k == pl.num_programs(3) - 1)
    def _finalize():
        o_ref[...] = (acc_ref[...] +
                      b_ref[...].astype(jnp.float32)).astype(o_ref.dtype)


def _stacked_linear(x, w, b, *, tm_pref=256, tn_pref=256, tk_pref=512):
    """y[g] = x[g] @ w[g] + b[g] for g in range(G), as one tiled pallas_call.

    x: [G, M, K], w: [G, K, N], b: [G, 1, N] -> [G, M, N].
    (On v5e prefer tm_pref=tn_pref=128 to match its 4x128x128 MXU.)
    """
    G, M, K = x.shape
    _, _, N = w.shape
    tm = _pick_tile(M, tm_pref, 8)
    tn = _pick_tile(N, tn_pref, 128)
    tk = _pick_tile(K, tk_pref, 128)
    grid = (G, M // tm, N // tn, K // tk)

    itemsize = jnp.dtype(x.dtype).itemsize
    cost = pl.CostEstimate(
        flops=2 * G * M * N * K,
        transcendentals=0,
        bytes_accessed=itemsize * (x.size + w.size + b.size + G * M * N))

    return pl.pallas_call(
        _linear_kernel,
        out_shape=jax.ShapeDtypeStruct((G, M, N), x.dtype),
        grid_spec=pltpu.PrefetchScalarGridSpec(
            num_scalar_prefetch=0,
            grid=grid,
            in_specs=[
                pl.BlockSpec((pl.Squeezed(), tm, tk),
                             lambda g, i, n, k: (g, i, k)),
                pl.BlockSpec((pl.Squeezed(), tk, tn),
                             lambda g, i, n, k: (g, k, n)),
                pl.BlockSpec((pl.Squeezed(), 1, tn),
                             lambda g, i, n, k: (g, 0, n)),
            ],
            out_specs=pl.BlockSpec((pl.Squeezed(), tm, tn),
                                   lambda g, i, n, k: (g, i, n)),
            scratch_shapes=[pltpu.VMEM((tm, tn), jnp.float32)],
        ),
        compiler_params=pltpu.CompilerParams(
            dimension_semantics=("parallel", "parallel", "parallel", "arbitrary"),
            vmem_limit_bytes=32 * 1024 * 1024),
        cost_estimate=cost,
    )(x, w, b)


# ------------------------- flash-style attention ----------------------------

def _attn_kernel(q_ref, k_ref, v_ref, o_ref, m_sc, l_sc, acc_sc, *,
                 num_heads, d_head):
    """One (batch, q-tile, kv-tile) grid step of online-softmax attention.

    q_ref: (tq, H), k_ref/v_ref: (tk, H) -- all heads, head-major columns.
    The 1/sqrt(d) scale is pre-folded into the Q projection weights.
    m/l/acc scratch persists across the kv grid axis (innermost, 'arbitrary').
    """
    ki = pl.program_id(2)

    @pl.when(ki == 0)
    def _init():
        m_sc[...] = jnp.full(m_sc.shape, -jnp.inf, m_sc.dtype)
        l_sc[...] = jnp.zeros(l_sc.shape, l_sc.dtype)
        acc_sc[...] = jnp.zeros(acc_sc.shape, acc_sc.dtype)

    # Static unroll over heads: each head is a static d_head-wide column slice
    # of the lane-dense (.., H) tiles, so no HBM head transpose is ever needed.
    for h in range(num_heads):
        cs = slice(h * d_head, (h + 1) * d_head)
        qh = q_ref[:, cs]                                    # (tq, d)
        kh = k_ref[:, cs]                                    # (tk, d)
        vh = v_ref[:, cs]                                    # (tk, d)

        # Scores: contract the last dims of both operands (no K transpose).
        s = jax.lax.dot_general(qh, kh, (((1,), (1,)), ((), ())),
                                preferred_element_type=jnp.float32)  # (tq, tk)

        m_prev = m_sc[h]                                     # (tq, 1)
        m_new = jnp.maximum(m_prev, jnp.max(s, axis=-1, keepdims=True))
        alpha = jnp.exp(m_prev - m_new)                      # (tq, 1)
        p = jnp.exp(s - m_new)                               # (tq, tk), f32

        l_sc[h] = alpha * l_sc[h] + jnp.sum(p, axis=-1, keepdims=True)
        pv = jax.lax.dot_general(p.astype(vh.dtype), vh,
                                 (((1,), (0,)), ((), ())),
                                 preferred_element_type=jnp.float32)  # (tq, d)
        acc_sc[:, cs] = alpha * acc_sc[:, cs] + pv
        m_sc[h] = m_new

    # TODO(synk): training-mode attention dropout (pltpu.prng_random_bits mask);
    # eval mode (identity) only.

    @pl.when(ki == pl.num_programs(2) - 1)
    def _finalize():
        # Normalize with one EUP reciprocal per head applied to the (tq, d)
        # accumulator columns (instead of dividing (tq, tk) probability tiles),
        # then a single lane-dense (tq, H) store.
        for h in range(num_heads):
            cs = slice(h * d_head, (h + 1) * d_head)
            inv_l = pl.reciprocal(l_sc[h], approx=True)      # (tq, 1)
            acc_sc[:, cs] = acc_sc[:, cs] * inv_l
        o_ref[...] = acc_sc[...].astype(o_ref.dtype)


def _flash_attention(qkv, batch, seq, num_heads, d_head, *,
                     tq_pref=256, tk_pref=256):
    """qkv: [3, batch*seq, H] (slabs = projected q, k, v) -> ctx [batch*seq, H]."""
    G, M, H = qkv.shape
    assert G == 3 and M == batch * seq and H == num_heads * d_head
    tq = _pick_tile(seq, tq_pref, 8)
    tk = _pick_tile(seq, tk_pref, 8)
    assert batch == 1 or (tq % 8 == 0 and tk % 8 == 0), \
        "sequence length must tile to a multiple of 8 when batch > 1"
    nq, nk = seq // tq, seq // tk
    grid = (batch, nq, nk)

    itemsize = jnp.dtype(qkv.dtype).itemsize
    cost = pl.CostEstimate(
        flops=4 * batch * num_heads * seq * seq * d_head,
        transcendentals=batch * num_heads * seq * seq,
        bytes_accessed=itemsize * (qkv.size + M * H))

    kernel = functools.partial(_attn_kernel, num_heads=num_heads, d_head=d_head)
    q_spec = pl.BlockSpec((pl.Squeezed(), tq, H),
                          lambda b, qi, ki: (0, b * nq + qi, 0))
    k_spec = pl.BlockSpec((pl.Squeezed(), tk, H),
                          lambda b, qi, ki: (1, b * nk + ki, 0))
    v_spec = pl.BlockSpec((pl.Squeezed(), tk, H),
                          lambda b, qi, ki: (2, b * nk + ki, 0))
    o_spec = pl.BlockSpec((tq, H), lambda b, qi, ki: (b * nq + qi, 0))

    return pl.pallas_call(
        kernel,
        out_shape=jax.ShapeDtypeStruct((M, H), qkv.dtype),
        grid_spec=pltpu.PrefetchScalarGridSpec(
            num_scalar_prefetch=0,
            grid=grid,
            in_specs=[q_spec, k_spec, v_spec],
            out_specs=o_spec,
            scratch_shapes=[
                pltpu.VMEM((num_heads, tq, 1), jnp.float32),   # running max m
                pltpu.VMEM((num_heads, tq, 1), jnp.float32),   # running sum l
                pltpu.VMEM((tq, H), jnp.float32),              # output accumulator
            ],
        ),
        compiler_params=pltpu.CompilerParams(
            dimension_semantics=("parallel", "parallel", "arbitrary"),
            vmem_limit_bytes=32 * 1024 * 1024),
        cost_estimate=cost,
    )(qkv, qkv, qkv)


# ------------------------------- module glue ---------------------------------

def init_params(key, hidden_size):
    """Base parameters matching nn.Linear shapes (weights stored as [in, out])."""
    ks = jax.random.split(key, 8)
    bound = 1.0 / (hidden_size ** 0.5)

    def u(k, shape):
        return jax.random.uniform(k, shape, jnp.float32, -bound, bound)

    return {
        "wq": u(ks[0], (hidden_size, hidden_size)), "bq": u(ks[1], (hidden_size,)),
        "wk": u(ks[2], (hidden_size, hidden_size)), "bk": u(ks[3], (hidden_size,)),
        "wv": u(ks[4], (hidden_size, hidden_size)), "bv": u(ks[5], (hidden_size,)),
        "wo": u(ks[6], (hidden_size, hidden_size)), "bo": u(ks[7], (hidden_size,)),
    }


def prepare_params(base, hidden_size, head_size):
    """Fuse Q/K/V weights on a leading axis and fold 1/sqrt(d) into Q."""
    d = hidden_size // head_size
    scale = d ** (-0.5)
    w_qkv = jnp.stack([base["wq"] * scale, base["wk"], base["wv"]])      # [3,H,H]
    b_qkv = jnp.stack([base["bq"] * scale, base["bk"], base["bv"]])[:, None, :]
    return {"w_qkv": w_qkv, "b_qkv": b_qkv,
            "w_o": base["wo"], "b_o": base["bo"][None, :]}


def multi_head_attention(params, q, k, v, head_size, attn_bias=None):
    """Forward pass of MultiHeadAttention.  q, k, v: [B, S, hidden]."""
    assert attn_bias is None  # TODO(synk): optional additive attn_bias input
    B, S, H = q.shape
    num_heads = head_size                      # PyTorch arg naming: head_size = #heads
    d = H // num_heads
    M = B * S

    # Fused Q/K/V projection: one tiled pallas_call over a stacked {q,k,v} axis.
    x = jnp.stack([q.reshape(M, H), k.reshape(M, H), v.reshape(M, H)])   # [3,M,H]
    qkv = _stacked_linear(x, params["w_qkv"], params["b_qkv"])           # [3,M,H]

    # Flash attention reads the projected slabs directly (no HBM transposes)
    # and writes a lane-dense [M, H] context that feeds the output projection.
    ctx = _flash_attention(qkv, B, S, num_heads, d)                      # [M, H]

    out = _stacked_linear(ctx[None], params["w_o"][None],
                          params["b_o"][None])[0]                        # [M, H]
    return out.reshape(B, S, H)


# ---------------------------------- main --------------------------------------

if __name__ == "__main__":
    hidden_size = 32
    head_size = 4            # number of attention heads (PyTorch arg name)
    attention_dropout_rate = 0.0
    B, S = 2, 8

    key = jax.random.PRNGKey(0)
    kp, kq, kk, kv = jax.random.split(key, 4)
    base = init_params(kp, hidden_size)
    params = prepare_params(base, hidden_size, head_size)

    q = jax.random.normal(kq, (B, S, hidden_size), jnp.float32)
    k = jax.random.normal(kk, (B, S, hidden_size), jnp.float32)
    v = jax.random.normal(kv, (B, S, hidden_size), jnp.float32)

    fwd = jax.jit(functools.partial(multi_head_attention, head_size=head_size))
    out = jax.block_until_ready(fwd(params, q, k, v))
    assert out.shape == q.shape, out.shape

    # Pure-JAX reference (mirrors the PyTorch module exactly).
    def ref_forward(p, q, k, v):
        d = hidden_size // head_size
        M = B * S
        qf = q.reshape(M, -1) @ p["wq"] + p["bq"]
        kf = k.reshape(M, -1) @ p["wk"] + p["bk"]
        vf = v.reshape(M, -1) @ p["wv"] + p["bv"]
        qh = qf.reshape(B, S, head_size, d).transpose(0, 2, 1, 3) * d ** (-0.5)
        kh = kf.reshape(B, S, head_size, d).transpose(0, 2, 1, 3)
        vh = vf.reshape(B, S, head_size, d).transpose(0, 2, 1, 3)
        s = jnp.einsum("bhqd,bhkd->bhqk", qh, kh)
        pr = jax.nn.softmax(s, axis=-1)
        c = jnp.einsum("bhqk,bhkd->bhqd", pr, vh)
        c = c.transpose(0, 2, 1, 3).reshape(M, head_size * d)
        return (c @ p["wo"] + p["bo"]).reshape(B, S, hidden_size)

    ref = ref_forward(base, q, k, v)
    err = float(jnp.max(jnp.abs(out - ref)))
    assert jnp.allclose(out, ref, atol=2e-3, rtol=2e-3), err

    print("KERNEL_OK")
</pallas_src>

<mosaic_0001>
module attributes {stable_mosaic.version = 11 : i64} {
  func.func @_attn_kernel(%arg0: i32, %arg1: i32, %arg2: i32, %arg3: memref<1x8x32xf32, #tpu.memory_space<vmem>>, %arg4: memref<1x8x32xf32, #tpu.memory_space<vmem>>, %arg5: memref<1x8x32xf32, #tpu.memory_space<vmem>>, %arg6: memref<8x32xf32, #tpu.memory_space<vmem>>, %arg7: memref<4x8x1xf32, #tpu.memory_space<vmem>>, %arg8: memref<4x8x1xf32, #tpu.memory_space<vmem>>, %arg9: memref<8x32xf32, #tpu.memory_space<vmem>>) attributes {dimension_semantics = [#tpu.dimension_semantics<parallel>, #tpu.dimension_semantics<parallel>, #tpu.dimension_semantics<arbitrary>], iteration_bounds = array<i64: 2, 1, 1>, scalar_prefetch = 0 : i64, scratch_operands = 3 : i64, tpu.core_type = #tpu.core_type<tc>, window_params = [{transform_indices = @transform_0, window_bounds = array<i64: 1, 8, 32>}, {transform_indices = @transform_1, window_bounds = array<i64: 1, 8, 32>}, {transform_indices = @transform_2, window_bounds = array<i64: 1, 8, 32>}, {transform_indices = @transform_3, window_bounds = array<i64: 8, 32>}]} {
    %c0_i32 = arith.constant 0 : i32
    %0 = arith.cmpi eq, %arg2, %c0_i32 : i32
    %1 = arith.extui %0 : i1 to i32
    %c0_i32_0 = arith.constant 0 : i32
    %2 = arith.cmpi ne, %1, %c0_i32_0 : i32
    scf.if %2 {
      %cst_111 = arith.constant 0xFF800000 : f32
      %146 = vector.broadcast %cst_111 : f32 to vector<4x8x1xf32>
      %c0_112 = arith.constant 0 : index
      %c0_113 = arith.constant 0 : index
      %c0_114 = arith.constant 0 : index
      %147 = vector.load %arg7[%c0_112, %c0_113, %c0_114] : memref<4x8x1xf32, #tpu.memory_space<vmem>>, vector<4x8x1xf32>
      tpu.vector_store %arg7[%c0_112, %c0_113, %c0_114], %146 {strides = array<i32>} : memref<4x8x1xf32, #tpu.memory_space<vmem>>, vector<4x8x1xf32>,
      %cst_115 = arith.constant 0.000000e+00 : f32
      %148 = vector.broadcast %cst_115 : f32 to vector<4x8x1xf32>
      %c0_116 = arith.constant 0 : index
      %c0_117 = arith.constant 0 : index
      %c0_118 = arith.constant 0 : index
      %149 = vector.load %arg8[%c0_116, %c0_117, %c0_118] : memref<4x8x1xf32, #tpu.memory_space<vmem>>, vector<4x8x1xf32>
      tpu.vector_store %arg8[%c0_116, %c0_117, %c0_118], %148 {strides = array<i32>} : memref<4x8x1xf32, #tpu.memory_space<vmem>>, vector<4x8x1xf32>,
      %cst_119 = arith.constant 0.000000e+00 : f32
      %150 = vector.broadcast %cst_119 : f32 to vector<8x32xf32>
      %c0_120 = arith.constant 0 : index
      %c0_121 = arith.constant 0 : index
      %151 = vector.load %arg9[%c0_120, %c0_121] : memref<8x32xf32, #tpu.memory_space<vmem>>, vector<8x32xf32>
      tpu.vector_store %arg9[%c0_120, %c0_121], %150 {strides = array<i32>} : memref<8x32xf32, #tpu.memory_space<vmem>>, vector<8x32xf32>,
    } else {
    }
    %c0 = arith.constant 0 : index
    %c0_1 = arith.constant 0 : index
    %c0_2 = arith.constant 0 : index
    %3 = vector.load %arg3[%c0, %c0_1, %c0_2] : memref<1x8x32xf32, #tpu.memory_space<vmem>>, vector<1x8x8xf32>
    %4 = vector.shape_cast %3 : vector<1x8x8xf32> to vector<8x8xf32>
    %c0_3 = arith.constant 0 : index
    %c0_4 = arith.constant 0 : index
    %c0_5 = arith.constant 0 : index
    %5 = vector.load %arg4[%c0_3, %c0_4, %c0_5] : memref<1x8x32xf32, #tpu.memory_space<vmem>>, vector<1x8x8xf32>
    %6 = vector.shape_cast %5 : vector<1x8x8xf32> to vector<8x8xf32>
    %c0_6 = arith.constant 0 : index
    %c0_7 = arith.constant 0 : index
    %c0_8 = arith.constant 0 : index
    %7 = vector.load %arg5[%c0_6, %c0_7, %c0_8] : memref<1x8x32xf32, #tpu.memory_space<vmem>>, vector<1x8x8xf32>
    %8 = vector.shape_cast %7 : vector<1x8x8xf32> to vector<8x8xf32>
    %cst = arith.constant dense<0.000000e+00> : vector<8x8xf32>
    %9 = tpu.matmul %4, %6, %cst {dimension_numbers = #tpu.dot_dimension_numbers<[1], [1], [0], [0], [0, 0, 1, 0], [], []>} : vector<8x8xf32>, vector<8x8xf32>, vector<8x8xf32> -> vector<8x8xf32>
    %c0_9 = arith.constant 0 : index
    %c0_10 = arith.constant 0 : index
    %c0_11 = arith.constant 0 : index
    %10 = vector.load %arg7[%c0_9, %c0_10, %c0_11] : memref<4x8x1xf32, #tpu.memory_space<vmem>>, vector<1x8x1xf32>
    %11 = vector.shape_cast %10 : vector<1x8x1xf32> to vector<8x1xf32>
    %cst_12 = arith.constant dense<0xFF800000> : vector<8xf32>
    %12 = vector.multi_reduction <maximumf>, %9, %cst_12 [1] : vector<8x8xf32> to vector<8xf32>
    %13 = vector.shape_cast %12 : vector<8xf32> to vector<8x1xf32>
    %14 = arith.maximumf %11, %13 : vector<8x1xf32>
    %15 = arith.subf %11, %14 : vector<8x1xf32>
    %16 = math.exp %15 : vector<8x1xf32>
    %17 = vector.broadcast %14 : vector<8x1xf32> to vector<8x8xf32>
    %18 = arith.subf %9, %17 : vector<8x8xf32>
    %19 = math.exp %18 : vector<8x8xf32>
    %c0_13 = arith.constant 0 : index
    %c0_14 = arith.constant 0 : index
    %c0_15 = arith.constant 0 : index
    %20 = vector.load %arg8[%c0_13, %c0_14, %c0_15] : memref<4x8x1xf32, #tpu.memory_space<vmem>>, vector<1x8x1xf32>
    %21 = vector.shape_cast %20 : vector<1x8x1xf32> to vector<8x1xf32>
    %22 = arith.mulf %16, %21 : vector<8x1xf32>
    %cst_16 = arith.constant dense<0.000000e+00> : vector<8xf32>
    %23 = vector.multi_reduction <add>, %19, %cst_16 [1] : vector<8x8xf32> to vector<8xf32>
    %24 = vector.shape_cast %23 : vector<8xf32> to vector<8x1xf32>
    %25 = arith.addf %22, %24 : vector<8x1xf32>
    %c0_17 = arith.constant 0 : index
    %c0_18 = arith.constant 0 : index
    %c0_19 = arith.constant 0 : index
    %26 = vector.load %arg8[%c0_17, %c0_18, %c0_19] : memref<4x8x1xf32, #tpu.memory_space<vmem>>, vector<1x8x1xf32>
    %27 = vector.shape_cast %26 : vector<1x8x1xf32> to vector<8x1xf32>
    %28 = vector.shape_cast %25 : vector<8x1xf32> to vector<1x8x1xf32>
    tpu.vector_store %arg8[%c0_17, %c0_18, %c0_19], %28 {strides = array<i32>} : memref<4x8x1xf32, #tpu.memory_space<vmem>>, vector<1x8x1xf32>,
    %cst_20 = arith.constant dense<0.000000e+00> : vector<8x8xf32>
    %29 = tpu.matmul %19, %8, %cst_20 {dimension_numbers = #tpu.dot_dimension_numbers<[1], [0], [0], [1], [0, 0, 1, 1], [], []>} : vector<8x8xf32>, vector<8x8xf32>, vector<8x8xf32> -> vector<8x8xf32>
    %c0_21 = arith.constant 0 : index
    %c0_22 = arith.constant 0 : index
    %30 = vector.load %arg9[%c0_21, %c0_22] : memref<8x32xf32, #tpu.memory_space<vmem>>, vector<8x8xf32>
    %31 = vector.broadcast %16 : vector<8x1xf32> to vector<8x8xf32>
    %32 = arith.mulf %31, %30 : vector<8x8xf32>
    %33 = arith.addf %32, %29 : vector<8x8xf32>
    %c0_23 = arith.constant 0 : index
    %c0_24 = arith.constant 0 : index
    %34 = vector.load %arg9[%c0_23, %c0_24] : memref<8x32xf32, #tpu.memory_space<vmem>>, vector<8x8xf32>
    tpu.vector_store %arg9[%c0_23, %c0_24], %33 {strides = array<i32>} : memref<8x32xf32, #tpu.memory_space<vmem>>, vector<8x8xf32>,
    %c0_25 = arith.constant 0 : index
    %c0_26 = arith.constant 0 : index
    %c0_27 = arith.constant 0 : index
    %35 = vector.load %arg7[%c0_25, %c0_26, %c0_27] : memref<4x8x1xf32, #tpu.memory_space<vmem>>, vector<1x8x1xf32>
    %36 = vector.shape_cast %35 : vector<1x8x1xf32> to vector<8x1xf32>
    %37 = vector.shape_cast %14 : vector<8x1xf32> to vector<1x8x1xf32>
    tpu.vector_store %arg7[%c0_25, %c0_26, %c0_27], %37 {strides = array<i32>} : memref<4x8x1xf32, #tpu.memory_space<vmem>>, vector<1x8x1xf32>,
    %c0_28 = arith.constant 0 : index
    %c0_29 = arith.constant 0 : index
    %c8 = arith.constant 8 : index
    %38 = vector.load %arg3[%c0_28, %c0_29, %c8] : memref<1x8x32xf32, #tpu.memory_space<vmem>>, vector<1x8x8xf32>
    %39 = vector.shape_cast %38 : vector<1x8x8xf32> to vector<8x8xf32>
    %c0_30 = arith.constant 0 : index
    %c0_31 = arith.constant 0 : index
    %c8_32 = arith.constant 8 : index
    %40 = vector.load %arg4[%c0_30, %c0_31, %c8_32] : memref<1x8x32xf32, #tpu.memory_space<vmem>>, vector<1x8x8xf32>
    %41 = vector.shape_cast %40 : vector<1x8x8xf32> to vector<8x8xf32>
    %c0_33 = arith.constant 0 : index
    %c0_34 = arith.constant 0 : index
    %c8_35 = arith.constant 8 : index
    %42 = vector.load %arg5[%c0_33, %c0_34, %c8_35] : memref<1x8x32xf32, #tpu.memory_space<vmem>>, vector<1x8x8xf32>
    %43 = vector.shape_cast %42 : vector<1x8x8xf32> to vector<8x8xf32>
    %cst_36 = arith.constant dense<0.000000e+00> : vector<8x8xf32>
    %44 = tpu.matmul %39, %41, %cst_36 {dimension_numbers = #tpu.dot_dimension_numbers<[1], [1], [0], [0], [0, 0, 1, 0], [], []>} : vector<8x8xf32>, vector<8x8xf32>, vector<8x8xf32> -> vector<8x8xf32>
    %c1 = arith.constant 1 : index
    %c0_37 = arith.constant 0 : index
    %c0_38 = arith.constant 0 : index
    %45 = vector.load %arg7[%c1, %c0_37, %c0_38] : memref<4x8x1xf32, #tpu.memory_space<vmem>>, vector<1x8x1xf32>
    %46 = vector.shape_cast %45 : vector<1x8x1xf32> to vector<8x1xf32>
    %cst_39 = arith.constant dense<0xFF800000> : vector<8xf32>
    %47 = vector.multi_reduction <maximumf>, %44, %cst_39 [1] : vector<8x8xf32> to vector<8xf32>
    %48 = vector.shape_cast %47 : vector<8xf32> to vector<8x1xf32>
    %49 = arith.maximumf %46, %48 : vector<8x1xf32>
    %50 = arith.subf %46, %49 : vector<8x1xf32>
    %51 = math.exp %50 : vector<8x1xf32>
    %52 = vector.broadcast %49 : vector<8x1xf32> to vector<8x8xf32>
    %53 = arith.subf %44, %52 : vector<8x8xf32>
    %54 = math.exp %53 : vector<8x8xf32>
    %c1_40 = arith.constant 1 : index
    %c0_41 = arith.constant 0 : index
    %c0_42 = arith.constant 0 : index
    %55 = vector.load %arg8[%c1_40, %c0_41, %c0_42] : memref<4x8x1xf32, #tpu.memory_space<vmem>>, vector<1x8x1xf32>
    %56 = vector.shape_cast %55 : vector<1x8x1xf32> to vector<8x1xf32>
    %57 = arith.mulf %51, %56 : vector<8x1xf32>
    %cst_43 = arith.constant dense<0.000000e+00> : vector<8xf32>
    %58 = vector.multi_reduction <add>, %54, %cst_43 [1] : vector<8x8xf32> to vector<8xf32>
    %59 = vector.shape_cast %58 : vector<8xf32> to vector<8x1xf32>
    %60 = arith.addf %57, %59 : vector<8x1xf32>
    %c1_44 = arith.constant 1 : index
    %c0_45 = arith.constant 0 : index
    %c0_46 = arith.constant 0 : index
    %61 = vector.load %arg8[%c1_44, %c0_45, %c0_46] : memref<4x8x1xf32, #tpu.memory_space<vmem>>, vector<1x8x1xf32>
    %62 = vector.shape_cast %61 : vector<1x8x1xf32> to vector<8x1xf32>
    %63 = vector.shape_cast %60 : vector<8x1xf32> to vector<1x8x1xf32>
    tpu.vector_store %arg8[%c1_44, %c0_45, %c0_46], %63 {strides = array<i32>} : memref<4x8x1xf32, #tpu.memory_space<vmem>>, vector<1x8x1xf32>,
    %cst_47 = arith.constant dense<0.000000e+00> : vector<8x8xf32>
    %64 = tpu.matmul %54, %43, %cst_47 {dimension_numbers = #tpu.dot_dimension_numbers<[1], [0], [0], [1], [0, 0, 1, 1], [], []>} : vector<8x8xf32>, vector<8x8xf32>, vector<8x8xf32> -> vector<8x8xf32>
    %c0_48 = arith.constant 0 : index
    %c8_49 = arith.constant 8 : index
    %65 = vector.load %arg9[%c0_48, %c8_49] : memref<8x32xf32, #tpu.memory_space<vmem>>, vector<8x8xf32>
    %66 = vector.broadcast %51 : vector<8x1xf32> to vector<8x8xf32>
    %67 = arith.mulf %66, %65 : vector<8x8xf32>
    %68 = arith.addf %67, %64 : vector<8x8xf32>
    %c0_50 = arith.constant 0 : index
    %c8_51 = arith.constant 8 : index
    %69 = vector.load %arg9[%c0_50, %c8_51] : memref<8x32xf32, #tpu.memory_space<vmem>>, vector<8x8xf32>
    tpu.vector_store %arg9[%c0_50, %c8_51], %68 {strides = array<i32>} : memref<8x32xf32, #tpu.memory_space<vmem>>, vector<8x8xf32>,
    %c1_52 = arith.constant 1 : index
    %c0_53 = arith.constant 0 : index
    %c0_54 = arith.constant 0 : index
    %70 = vector.load %arg7[%c1_52, %c0_53, %c0_54] : memref<4x8x1xf32, #tpu.memory_space<vmem>>, vector<1x8x1xf32>
    %71 = vector.shape_cast %70 : vector<1x8x1xf32> to vector<8x1xf32>
    %72 = vector.shape_cast %49 : vector<8x1xf32> to vector<1x8x1xf32>
    tpu.vector_store %arg7[%c1_52, %c0_53, %c0_54], %72 {strides = array<i32>} : memref<4x8x1xf32, #tpu.memory_space<vmem>>, vector<1x8x1xf32>,
    %c0_55 = arith.constant 0 : index
    %c0_56 = arith.constant 0 : index
    %c16 = arith.constant 16 : index
    %73 = vector.load %arg3[%c0_55, %c0_56, %c16] : memref<1x8x32xf32, #tpu.memory_space<vmem>>, vector<1x8x8xf32>
    %74 = vector.shape_cast %73 : vector<1x8x8xf32> to vector<8x8xf32>
    %c0_57 = arith.constant 0 : index
    %c0_58 = arith.constant 0 : index
    %c16_59 = arith.constant 16 : index
    %75 = vector.load %arg4[%c0_57, %c0_58, %c16_59] : memref<1x8x32xf32, #tpu.memory_space<vmem>>, vector<1x8x8xf32>
    %76 = vector.shape_cast %75 : vector<1x8x8xf32> to vector<8x8xf32>
    %c0_60 = arith.constant 0 : index
    %c0_61 = arith.constant 0 : index
    %c16_62 = arith.constant 16 : index
    %77 = vector.load %arg5[%c0_60, %c0_61, %c16_62] : memref<1x8x32xf32, #tpu.memory_space<vmem>>, vector<1x8x8xf32>
    %78 = vector.shape_cast %77 : vector<1x8x8xf32> to vector<8x8xf32>
    %cst_63 = arith.constant dense<0.000000e+00> : vector<8x8xf32>
    %79 = tpu.matmul %74, %76, %cst_63 {dimension_numbers = #tpu.dot_dimension_numbers<[1], [1], [0], [0], [0, 0, 1, 0], [], []>} : vector<8x8xf32>, vector<8x8xf32>, vector<8x8xf32> -> vector<8x8xf32>
    %c2 = arith.constant 2 : index
    %c0_64 = arith.constant 0 : index
    %c0_65 = arith.constant 0 : index
    %80 = vector.load %arg7[%c2, %c0_64, %c0_65] : memref<4x8x1xf32, #tpu.memory_space<vmem>>, vector<1x8x1xf32>
    %81 = vector.shape_cast %80 : vector<1x8x1xf32> to vector<8x1xf32>
    %cst_66 = arith.constant dense<0xFF800000> : vector<8xf32>
    %82 = vector.multi_reduction <maximumf>, %79, %cst_66 [1] : vector<8x8xf32> to vector<8xf32>
    %83 = vector.shape_cast %82 : vector<8xf32> to vector<8x1xf32>
    %84 = arith.maximumf %81, %83 : vector<8x1xf32>
    %85 = arith.subf %81, %84 : vector<8x1xf32>
    %86 = math.exp %85 : vector<8x1xf32>
    %87 = vector.broadcast %84 : vector<8x1xf32> to vector<8x8xf32>
    %88 = arith.subf %79, %87 : vector<8x8xf32>
    %89 = math.exp %88 : vector<8x8xf32>
    %c2_67 = arith.constant 2 : index
    %c0_68 = arith.constant 0 : index
    %c0_69 = arith.constant 0 : index
    %90 = vector.load %arg8[%c2_67, %c0_68, %c0_69] : memref<4x8x1xf32, #tpu.memory_space<vmem>>, vector<1x8x1xf32>
    %91 = vector.shape_cast %90 : vector<1x8x1xf32> to vector<8x1xf32>
    %92 = arith.mulf %86, %91 : vector<8x1xf32>
    %cst_70 = arith.constant dense<0.000000e+00> : vector<8xf32>
    %93 = vector.multi_reduction <add>, %89, %cst_70 [1] : vector<8x8xf32> to vector<8xf32>
    %94 = vector.shape_cast %93 : vector<8xf32> to vector<8x1xf32>
    %95 = arith.addf %92, %94 : vector<8x1xf32>
    %c2_71 = arith.constant 2 : index
    %c0_72 = arith.constant 0 : index
    %c0_73 = arith.constant 0 : index
    %96 = vector.load %arg8[%c2_71, %c0_72, %c0_73] : memref<4x8x1xf32, #tpu.memory_space<vmem>>, vector<1x8x1xf32>
    %97 = vector.shape_cast %96 : vector<1x8x1xf32> to vector<8x1xf32>
    %98 = vector.shape_cast %95 : vector<8x1xf32> to vector<1x8x1xf32>
    tpu.vector_store %arg8[%c2_71, %c0_72, %c0_73], %98 {strides = array<i32>} : memref<4x8x1xf32, #tpu.memory_space<vmem>>, vector<1x8x1xf32>,
    %cst_74 = arith.constant dense<0.000000e+00> : vector<8x8xf32>
    %99 = tpu.matmul %89, %78, %cst_74 {dimension_numbers = #tpu.dot_dimension_numbers<[1], [0], [0], [1], [0, 0, 1, 1], [], []>} : vector<8x8xf32>, vector<8x8xf32>, vector<8x8xf32> -> vector<8x8xf32>
    %c0_75 = arith.constant 0 : index
    %c16_76 = arith.constant 16 : index
    %100 = vector.load %arg9[%c0_75, %c16_76] : memref<8x32xf32, #tpu.memory_space<vmem>>, vector<8x8xf32>
    %101 = vector.broadcast %86 : vector<8x1xf32> to vector<8x8xf32>
    %102 = arith.mulf %101, %100 : vector<8x8xf32>
    %103 = arith.addf %102, %99 : vector<8x8xf32>
    %c0_77 = arith.constant 0 : index
    %c16_78 = arith.constant 16 : index
    %104 = vector.load %arg9[%c0_77, %c16_78] : memref<8x32xf32, #tpu.memory_space<vmem>>, vector<8x8xf32>
    tpu.vector_store %arg9[%c0_77, %c16_78], %103 {strides = array<i32>} : memref<8x32xf32, #tpu.memory_space<vmem>>, vector<8x8xf32>,
    %c2_79 = arith.constant 2 : index
    %c0_80 = arith.constant 0 : index
    %c0_81 = arith.constant 0 : index
    %105 = vector.load %arg7[%c2_79, %c0_80, %c0_81] : memref<4x8x1xf32, #tpu.memory_space<vmem>>, vector<1x8x1xf32>
    %106 = vector.shape_cast %105 : vector<1x8x1xf32> to vector<8x1xf32>
    %107 = vector.shape_cast %84 : vector<8x1xf32> to vector<1x8x1xf32>
    tpu.vector_store %arg7[%c2_79, %c0_80, %c0_81], %107 {strides = array<i32>} : memref<4x8x1xf32, #tpu.memory_space<vmem>>, vector<1x8x1xf32>,
    %c0_82 = arith.constant 0 : index
    %c0_83 = arith.constant 0 : index
    %c24 = arith.constant 24 : index
    %108 = vector.load %arg3[%c0_82, %c0_83, %c24] : memref<1x8x32xf32, #tpu.memory_space<vmem>>, vector<1x8x8xf32>
    %109 = vector.shape_cast %108 : vector<1x8x8xf32> to vector<8x8xf32>
    %c0_84 = arith.constant 0 : index
    %c0_85 = arith.constant 0 : index
    %c24_86 = arith.constant 24 : index
    %110 = vector.load %arg4[%c0_84, %c0_85, %c24_86] : memref<1x8x32xf32, #tpu.memory_space<vmem>>, vector<1x8x8xf32>
    %111 = vector.shape_cast %110 : vector<1x8x8xf32> to vector<8x8xf32>
    %c0_87 = arith.constant 0 : index
    %c0_88 = arith.constant 0 : index
    %c24_89 = arith.constant 24 : index
    %112 = vector.load %arg5[%c0_87, %c0_88, %c24_89] : memref<1x8x32xf32, #tpu.memory_space<vmem>>, vector<1x8x8xf32>
    %113 = vector.shape_cast %112 : vector<1x8x8xf32> to vector<8x8xf32>
    %cst_90 = arith.constant dense<0.000000e+00> : vector<8x8xf32>
    %114 = tpu.matmul %109, %111, %cst_90 {dimension_numbers = #tpu.dot_dimension_numbers<[1], [1], [0], [0], [0, 0, 1, 0], [], []>} : vector<8x8xf32>, vector<8x8xf32>, vector<8x8xf32> -> vector<8x8xf32>
    %c3 = arith.constant 3 : index
    %c0_91 = arith.constant 0 : index
    %c0_92 = arith.constant 0 : index
    %115 = vector.load %arg7[%c3, %c0_91, %c0_92] : memref<4x8x1xf32, #tpu.memory_space<vmem>>, vector<1x8x1xf32>
    %116 = vector.shape_cast %115 : vector<1x8x1xf32> to vector<8x1xf32>
    %cst_93 = arith.constant dense<0xFF800000> : vector<8xf32>
    %117 = vector.multi_reduction <maximumf>, %114, %cst_93 [1] : vector<8x8xf32> to vector<8xf32>
    %118 = vector.shape_cast %117 : vector<8xf32> to vector<8x1xf32>
    %119 = arith.maximumf %116, %118 : vector<8x1xf32>
    %120 = arith.subf %116, %119 : vector<8x1xf32>
    %121 = math.exp %120 : vector<8x1xf32>
    %122 = vector.broadcast %119 : vector<8x1xf32> to vector<8x8xf32>
    %123 = arith.subf %114, %122 : vector<8x8xf32>
    %124 = math.exp %123 : vector<8x8xf32>
    %c3_94 = arith.constant 3 : index
    %c0_95 = arith.constant 0 : index
    %c0_96 = arith.constant 0 : index
    %125 = vector.load %arg8[%c3_94, %c0_95, %c0_96] : memref<4x8x1xf32, #tpu.memory_space<vmem>>, vector<1x8x1xf32>
    %126 = vector.shape_cast %125 : vector<1x8x1xf32> to vector<8x1xf32>
    %127 = arith.mulf %121, %126 : vector<8x1xf32>
    %cst_97 = arith.constant dense<0.000000e+00> : vector<8xf32>
    %128 = vector.multi_reduction <add>, %124, %cst_97 [1] : vector<8x8xf32> to vector<8xf32>
    %129 = vector.shape_cast %128 : vector<8xf32> to vector<8x1xf32>
    %130 = arith.addf %127, %129 : vector<8x1xf32>
    %c3_98 = arith.constant 3 : index
    %c0_99 = arith.constant 0 : index
    %c0_100 = arith.constant 0 : index
    %131 = vector.load %arg8[%c3_98, %c0_99, %c0_100] : memref<4x8x1xf32, #tpu.memory_space<vmem>>, vector<1x8x1xf32>
    %132 = vector.shape_cast %131 : vector<1x8x1xf32> to vector<8x1xf32>
    %133 = vector.shape_cast %130 : vector<8x1xf32> to vector<1x8x1xf32>
    tpu.vector_store %arg8[%c3_98, %c0_99, %c0_100], %133 {strides = array<i32>} : memref<4x8x1xf32, #tpu.memory_space<vmem>>, vector<1x8x1xf32>,
    %cst_101 = arith.constant dense<0.000000e+00> : vector<8x8xf32>
    %134 = tpu.matmul %124, %113, %cst_101 {dimension_numbers = #tpu.dot_dimension_numbers<[1], [0], [0], [1], [0, 0, 1, 1], [], []>} : vector<8x8xf32>, vector<8x8xf32>, vector<8x8xf32> -> vector<8x8xf32>
    %c0_102 = arith.constant 0 : index
    %c24_103 = arith.constant 24 : index
    %135 = vector.load %arg9[%c0_102, %c24_103] : memref<8x32xf32, #tpu.memory_space<vmem>>, vector<8x8xf32>
    %136 = vector.broadcast %121 : vector<8x1xf32> to vector<8x8xf32>
    %137 = arith.mulf %136, %135 : vector<8x8xf32>
    %138 = arith.addf %137, %134 : vector<8x8xf32>
    %c0_104 = arith.constant 0 : index
    %c24_105 = arith.constant 24 : index
    %139 = vector.load %arg9[%c0_104, %c24_105] : memref<8x32xf32, #tpu.memory_space<vmem>>, vector<8x8xf32>
    tpu.vector_store %arg9[%c0_104, %c24_105], %138 {strides = array<i32>} : memref<8x32xf32, #tpu.memory_space<vmem>>, vector<8x8xf32>,
    %c3_106 = arith.constant 3 : index
    %c0_107 = arith.constant 0 : index
    %c0_108 = arith.constant 0 : index
    %140 = vector.load %arg7[%c3_106, %c0_107, %c0_108] : memref<4x8x1xf32, #tpu.memory_space<vmem>>, vector<1x8x1xf32>
    %141 = vector.shape_cast %140 : vector<1x8x1xf32> to vector<8x1xf32>
    %142 = vector.shape_cast %119 : vector<8x1xf32> to vector<1x8x1xf32>
    tpu.vector_store %arg7[%c3_106, %c0_107, %c0_108], %142 {strides = array<i32>} : memref<4x8x1xf32, #tpu.memory_space<vmem>>, vector<1x8x1xf32>,
    %c0_i32_109 = arith.constant 0 : i32
    %143 = arith.cmpi eq, %arg2, %c0_i32_109 : i32
    %144 = arith.extui %143 : i1 to i32
    %c0_i32_110 = arith.constant 0 : i32
    %145 = arith.cmpi ne, %144, %c0_i32_110 : i32
    scf.if %145 {
      %c0_111 = arith.constant 0 : index
      %c0_112 = arith.constant 0 : index
      %c0_113 = arith.constant 0 : index
      %146 = vector.load %arg8[%c0_111, %c0_112, %c0_113] : memref<4x8x1xf32, #tpu.memory_space<vmem>>, vector<1x8x1xf32>
      %147 = vector.shape_cast %146 : vector<1x8x1xf32> to vector<8x1xf32>
      %148 = tpu.reciprocal %147 {approx = true} : vector<8x1xf32> -> vector<8x1xf32>
      %c0_114 = arith.constant 0 : index
      %c0_115 = arith.constant 0 : index
      %149 = vector.load %arg9[%c0_114, %c0_115] : memref<8x32xf32, #tpu.memory_space<vmem>>, vector<8x8xf32>
      %150 = vector.broadcast %148 : vector<8x1xf32> to vector<8x8xf32>
      %151 = arith.mulf %149, %150 : vector<8x8xf32>
      %c0_116 = arith.constant 0 : index
      %c0_117 = arith.constant 0 : index
      %152 = vector.load %arg9[%c0_116, %c0_117] : memref<8x32xf32, #tpu.memory_space<vmem>>, vector<8x8xf32>
      tpu.vector_store %arg9[%c0_116, %c0_117], %151 {strides = array<i32>} : memref<8x32xf32, #tpu.memory_space<vmem>>, vector<8x8xf32>,
      %c1_118 = arith.constant 1 : index
      %c0_119 = arith.constant 0 : index
      %c0_120 = arith.constant 0 : index
      %153 = vector.load %arg8[%c1_118, %c0_119, %c0_120] : memref<4x8x1xf32, #tpu.memory_space<vmem>>, vector<1x8x1xf32>
      %154 = vector.shape_cast %153 : vector<1x8x1xf32> to vector<8x1xf32>
      %155 = tpu.reciprocal %154 {approx = true} : vector<8x1xf32> -> vector<8x1xf32>
      %c0_121 = arith.constant 0 : index
      %c8_122 = arith.constant 8 : index
      %156 = vector.load %arg9[%c0_121, %c8_122] : memref<8x32xf32, #tpu.memory_space<vmem>>, vector<8x8xf32>
      %157 = vector.broadcast %155 : vector<8x1xf32> to vector<8x8xf32>
      %158 = arith.mulf %156, %157 : vector<8x8xf32>
      %c0_123 = arith.constant 0 : index
      %c8_124 = arith.constant 8 : index
      %159 = vector.load %arg9[%c0_123, %c8_124] : memref<8x32xf32, #tpu.memory_space<vmem>>, vector<8x8xf32>
      tpu.vector_store %arg9[%c0_123, %c8_124], %158 {strides = array<i32>} : memref<8x32xf32, #tpu.memory_space<vmem>>, vector<8x8xf32>,
      %c2_125 = arith.constant 2 : index
      %c0_126 = arith.constant 0 : index
      %c0_127 = arith.constant 0 : index
      %160 = vector.load %arg8[%c2_125, %c0_126, %c0_127] : memref<4x8x1xf32, #tpu.memory_space<vmem>>, vector<1x8x1xf32>
      %161 = vector.shape_cast %160 : vector<1x8x1xf32> to vector<8x1xf32>
      %162 = tpu.reciprocal %161 {approx = true} : vector<8x1xf32> -> vector<8x1xf32>
      %c0_128 = arith.constant 0 : index
      %c16_129 = arith.constant 16 : index
      %163 = vector.load %arg9[%c0_128, %c16_129] : memref<8x32xf32, #tpu.memory_space<vmem>>, vector<8x8xf32>
      %164 = vector.broadcast %162 : vector<8x1xf32> to vector<8x8xf32>
      %165 = arith.mulf %163, %164 : vector<8x8xf32>
      %c0_130 = arith.constant 0 : index
      %c16_131 = arith.constant 16 : index
      %166 = vector.load %arg9[%c0_130, %c16_131] : memref<8x32xf32, #tpu.memory_space<vmem>>, vector<8x8xf32>
      tpu.vector_store %arg9[%c0_130, %c16_131], %165 {strides = array<i32>} : memref<8x32xf32, #tpu.memory_space<vmem>>, vector<8x8xf32>,
      %c3_132 = arith.constant 3 : index
      %c0_133 = arith.constant 0 : index
      %c0_134 = arith.constant 0 : index
      %167 = vector.load %arg8[%c3_132, %c0_133, %c0_134] : memref<4x8x1xf32, #tpu.memory_space<vmem>>, vector<1x8x1xf32>
      %168 = vector.shape_cast %167 : vector<1x8x1xf32> to vector<8x1xf32>
      %169 = tpu.reciprocal %168 {approx = true} : vector<8x1xf32> -> vector<8x1xf32>
      %c0_135 = arith.constant 0 : index
      %c24_136 = arith.constant 24 : index
      %170 = vector.load %arg9[%c0_135, %c24_136] : memref<8x32xf32, #tpu.memory_space<vmem>>, vector<8x8xf32>
      %171 = vector.broadcast %169 : vector<8x1xf32> to vector<8x8xf32>
      %172 = arith.mulf %170, %171 : vector<8x8xf32>
      %c0_137 = arith.constant 0 : index
      %c24_138 = arith.constant 24 : index
      %173 = vector.load %arg9[%c0_137, %c24_138] : memref<8x32xf32, #tpu.memory_space<vmem>>, vector<8x8xf32>
      tpu.vector_store %arg9[%c0_137, %c24_138], %172 {strides = array<i32>} : memref<8x32xf32, #tpu.memory_space<vmem>>, vector<8x8xf32>,
      %c0_139 = arith.constant 0 : index
      %c0_140 = arith.constant 0 : index
      %174 = vector.load %arg9[%c0_139, %c0_140] : memref<8x32xf32, #tpu.memory_space<vmem>>, vector<8x32xf32>
      %c0_141 = arith.constant 0 : index
      %c0_142 = arith.constant 0 : index
      %175 = vector.load %arg6[%c0_141, %c0_142] : memref<8x32xf32, #tpu.memory_space<vmem>>, vector<8x32xf32>
      tpu.vector_store %arg6[%c0_141, %c0_142], %174 {strides = array<i32>} : memref<8x32xf32, #tpu.memory_space<vmem>>, vector<8x32xf32>,
    } else {
    }
    return
  }
  func.func @transform_0(%arg0: i32, %arg1: i32, %arg2: i32) -> (i32, i32, i32) {
    %c1_i32 = arith.constant 1 : i32
    %0 = arith.muli %arg0, %c1_i32 : i32
    %1 = arith.addi %0, %arg1 : i32
    %c0_i32 = arith.constant 0 : i32
    %c0_i32_0 = arith.constant 0 : i32
    %c0_i32_1 = arith.constant 0 : i32
    return %c0_i32, %1, %c0_i32_0 : i32, i32, i32
  }
  func.func @transform_1(%arg0: i32, %arg1: i32, %arg2: i32) -> (i32, i32, i32) {
    %c1_i32 = arith.constant 1 : i32
    %0 = arith.muli %arg0, %c1_i32 : i32
    %1 = arith.addi %0, %arg2 : i32
    %c1_i32_0 = arith.constant 1 : i32
    %c0_i32 = arith.constant 0 : i32
    %c0_i32_1 = arith.constant 0 : i32
    return %c1_i32_0, %1, %c0_i32 : i32, i32, i32
  }
  func.func @transform_2(%arg0: i32, %arg1: i32, %arg2: i32) -> (i32, i32, i32) {
    %c1_i32 = arith.constant 1 : i32
    %0 = arith.muli %arg0, %c1_i32 : i32
    %1 = arith.addi %0, %arg2 : i32
    %c2_i32 = arith.constant 2 : i32
    %c0_i32 = arith.constant 0 : i32
    %c0_i32_0 = arith.constant 0 : i32
    return %c2_i32, %1, %c0_i32 : i32, i32, i32
  }
  func.func @transform_3(%arg0: i32, %arg1: i32, %arg2: i32) -> (i32, i32) {
    %c1_i32 = arith.constant 1 : i32
    %0 = arith.muli %arg0, %c1_i32 : i32
    %1 = arith.addi %0, %arg1 : i32
    %c0_i32 = arith.constant 0 : i32
    %c0_i32_0 = arith.constant 0 : i32
    return %1, %c0_i32 : i32, i32
  }
}

module attributes {stable_mosaic.version = 11 : i64} {
  func.func @_linear_kernel(%arg0: i32, %arg1: i32, %arg2: i32, %arg3: i32, %arg4: memref<1x16x32xf32, #tpu.memory_space<vmem>>, %arg5: memref<1x32x32xf32, #tpu.memory_space<vmem>>, %arg6: memref<1x1x32xf32, #tpu.memory_space<vmem>>, %arg7: memref<1x16x32xf32, #tpu.memory_space<vmem>>, %arg8: memref<16x32xf32, #tpu.memory_space<vmem>>) attributes {dimension_semantics = [#tpu.dimension_semantics<parallel>, #tpu.dimension_semantics<parallel>, #tpu.dimension_semantics<parallel>, #tpu.dimension_semantics<arbitrary>], iteration_bounds = array<i64: 1, 1, 1, 1>, scalar_prefetch = 0 : i64, scratch_operands = 1 : i64, tpu.core_type = #tpu.core_type<tc>, window_params = [{transform_indices = @transform_0, window_bounds = array<i64: 1, 16, 32>}, {transform_indices = @transform_1, window_bounds = array<i64: 1, 32, 32>}, {transform_indices = @transform_2, window_bounds = array<i64: 1, 1, 32>}, {transform_indices = @transform_3, window_bounds = array<i64: 1, 16, 32>}]} {
    %c0_i32 = arith.constant 0 : i32
    %0 = arith.cmpi eq, %arg3, %c0_i32 : i32
    %1 = arith.extui %0 : i1 to i32
    %c0_i32_0 = arith.constant 0 : i32
    %2 = arith.cmpi ne, %1, %c0_i32_0 : i32
    scf.if %2 {
      %cst_12 = arith.constant 0.000000e+00 : f32
      %14 = vector.broadcast %cst_12 : f32 to vector<16x32xf32>
      %c0_13 = arith.constant 0 : index
      %c0_14 = arith.constant 0 : index
      %15 = vector.load %arg8[%c0_13, %c0_14] : memref<16x32xf32, #tpu.memory_space<vmem>>, vector<16x32xf32>
      tpu.vector_store %arg8[%c0_13, %c0_14], %14 {strides = array<i32>} : memref<16x32xf32, #tpu.memory_space<vmem>>, vector<16x32xf32>,
    } else {
    }
    %c0 = arith.constant 0 : index
    %c0_1 = arith.constant 0 : index
    %3 = vector.load %arg8[%c0, %c0_1] : memref<16x32xf32, #tpu.memory_space<vmem>>, vector<16x32xf32>
    %c0_2 = arith.constant 0 : index
    %c0_3 = arith.constant 0 : index
    %c0_4 = arith.constant 0 : index
    %4 = vector.load %arg4[%c0_2, %c0_3, %c0_4] : memref<1x16x32xf32, #tpu.memory_space<vmem>>, vector<1x16x32xf32>
    %5 = vector.shape_cast %4 : vector<1x16x32xf32> to vector<16x32xf32>
    %c0_5 = arith.constant 0 : index
    %c0_6 = arith.constant 0 : index
    %c0_7 = arith.constant 0 : index
    %6 = vector.load %arg5[%c0_5, %c0_6, %c0_7] : memref<1x32x32xf32, #tpu.memory_space<vmem>>, vector<1x32x32xf32>
    %7 = vector.shape_cast %6 : vector<1x32x32xf32> to vector<32x32xf32>
    %cst = arith.constant dense<0.000000e+00> : vector<16x32xf32>
    %8 = tpu.matmul %5, %7, %cst {dimension_numbers = #tpu.dot_dimension_numbers<[1], [0], [0], [1], [0, 0, 1, 1], [], []>} : vector<16x32xf32>, vector<32x32xf32>, vector<16x32xf32> -> vector<16x32xf32>
    %9 = arith.addf %3, %8 : vector<16x32xf32>
    %c0_8 = arith.constant 0 : index
    %c0_9 = arith.constant 0 : index
    %10 = vector.load %arg8[%c0_8, %c0_9] : memref<16x32xf32, #tpu.memory_space<vmem>>, vector<16x32xf32>
    tpu.vector_store %arg8[%c0_8, %c0_9], %9 {strides = array<i32>} : memref<16x32xf32, #tpu.memory_space<vmem>>, vector<16x32xf32>,
    %c0_i32_10 = arith.constant 0 : i32
    %11 = arith.cmpi eq, %arg3, %c0_i32_10 : i32
    %12 = arith.extui %11 : i1 to i32
    %c0_i32_11 = arith.constant 0 : i32
    %13 = arith.cmpi ne, %12, %c0_i32_11 : i32
    scf.if %13 {
      %c0_12 = arith.constant 0 : index
      %c0_13 = arith.constant 0 : index
      %14 = vector.load %arg8[%c0_12, %c0_13] : memref<16x32xf32, #tpu.memory_space<vmem>>, vector<16x32xf32>
      %c0_14 = arith.constant 0 : index
      %c0_15 = arith.constant 0 : index
      %c0_16 = arith.constant 0 : index
      %15 = vector.load %arg6[%c0_14, %c0_15, %c0_16] : memref<1x1x32xf32, #tpu.memory_space<vmem>>, vector<1x1x32xf32>
      %16 = vector.shape_cast %15 : vector<1x1x32xf32> to vector<1x32xf32>
      %17 = vector.broadcast %16 : vector<1x32xf32> to vector<16x32xf32>
      %18 = arith.addf %14, %17 : vector<16x32xf32>
      %c0_17 = arith.constant 0 : index
      %c0_18 = arith.constant 0 : index
      %c0_19 = arith.constant 0 : index
      %19 = vector.load %arg7[%c0_17, %c0_18, %c0_19] : memref<1x16x32xf32, #tpu.memory_space<vmem>>, vector<1x16x32xf32>
      %20 = vector.shape_cast %19 : vector<1x16x32xf32> to vector<16x32xf32>
      %21 = vector.shape_cast %18 : vector<16x32xf32> to vector<1x16x32xf32>
      tpu.vector_store %arg7[%c0_17, %c0_18, %c0_19], %21 {strides = array<i32>} : memref<1x16x32xf32, #tpu.memory_space<vmem>>, vector<1x16x32xf32>,
    } else {
    }
    return
  }
  func.func @transform_0(%arg0: i32, %arg1: i32, %arg2: i32, %arg3: i32) -> (i32, i32, i32) {
    %c0_i32 = arith.constant 0 : i32
    return %arg0, %arg1, %arg3 : i32, i32, i32
  }
  func.func @transform_1(%arg0: i32, %arg1: i32, %arg2: i32, %arg3: i32) -> (i32, i32, i32) {
    %c0_i32 = arith.constant 0 : i32
    return %arg0, %arg3, %arg2 : i32, i32, i32
  }
  func.func @transform_2(%arg0: i32, %arg1: i32, %arg2: i32, %arg3: i32) -> (i32, i32, i32) {
    %c0_i32 = arith.constant 0 : i32
    %c0_i32_0 = arith.constant 0 : i32
    return %arg0, %c0_i32, %arg2 : i32, i32, i32
  }
  func.func @transform_3(%arg0: i32, %arg1: i32, %arg2: i32, %arg3: i32) -> (i32, i32, i32) {
    %c0_i32 = arith.constant 0 : i32
    return %arg0, %arg1, %arg2 : i32, i32, i32
  }
}

module attributes {stable_mosaic.version = 11 : i64} {
  func.func @_linear_kernel(%arg0: i32, %arg1: i32, %arg2: i32, %arg3: i32, %arg4: memref<1x16x32xf32, #tpu.memory_space<vmem>>, %arg5: memref<1x32x32xf32, #tpu.memory_space<vmem>>, %arg6: memref<1x1x32xf32, #tpu.memory_space<vmem>>, %arg7: memref<1x16x32xf32, #tpu.memory_space<vmem>>, %arg8: memref<16x32xf32, #tpu.memory_space<vmem>>) attributes {dimension_semantics = [#tpu.dimension_semantics<parallel>, #tpu.dimension_semantics<parallel>, #tpu.dimension_semantics<parallel>, #tpu.dimension_semantics<arbitrary>], iteration_bounds = array<i64: 3, 1, 1, 1>, scalar_prefetch = 0 : i64, scratch_operands = 1 : i64, tpu.core_type = #tpu.core_type<tc>, window_params = [{transform_indices = @transform_0, window_bounds = array<i64: 1, 16, 32>}, {transform_indices = @transform_1, window_bounds = array<i64: 1, 32, 32>}, {transform_indices = @transform_2, window_bounds = array<i64: 1, 1, 32>}, {transform_indices = @transform_3, window_bounds = array<i64: 1, 16, 32>}]} {
    %c0_i32 = arith.constant 0 : i32
    %0 = arith.cmpi eq, %arg3, %c0_i32 : i32
    %1 = arith.extui %0 : i1 to i32
    %c0_i32_0 = arith.constant 0 : i32
    %2 = arith.cmpi ne, %1, %c0_i32_0 : i32
    scf.if %2 {
      %cst_12 = arith.constant 0.000000e+00 : f32
      %14 = vector.broadcast %cst_12 : f32 to vector<16x32xf32>
      %c0_13 = arith.constant 0 : index
      %c0_14 = arith.constant 0 : index
      %15 = vector.load %arg8[%c0_13, %c0_14] : memref<16x32xf32, #tpu.memory_space<vmem>>, vector<16x32xf32>
      tpu.vector_store %arg8[%c0_13, %c0_14], %14 {strides = array<i32>} : memref<16x32xf32, #tpu.memory_space<vmem>>, vector<16x32xf32>,
    } else {
    }
    %c0 = arith.constant 0 : index
    %c0_1 = arith.constant 0 : index
    %3 = vector.load %arg8[%c0, %c0_1] : memref<16x32xf32, #tpu.memory_space<vmem>>, vector<16x32xf32>
    %c0_2 = arith.constant 0 : index
    %c0_3 = arith.constant 0 : index
    %c0_4 = arith.constant 0 : index
    %4 = vector.load %arg4[%c0_2, %c0_3, %c0_4] : memref<1x16x32xf32, #tpu.memory_space<vmem>>, vector<1x16x32xf32>
    %5 = vector.shape_cast %4 : vector<1x16x32xf32> to vector<16x32xf32>
    %c0_5 = arith.constant 0 : index
    %c0_6 = arith.constant 0 : index
    %c0_7 = arith.constant 0 : index
    %6 = vector.load %arg5[%c0_5, %c0_6, %c0_7] : memref<1x32x32xf32, #tpu.memory_space<vmem>>, vector<1x32x32xf32>
    %7 = vector.shape_cast %6 : vector<1x32x32xf32> to vector<32x32xf32>
    %cst = arith.constant dense<0.000000e+00> : vector<16x32xf32>
    %8 = tpu.matmul %5, %7, %cst {dimension_numbers = #tpu.dot_dimension_numbers<[1], [0], [0], [1], [0, 0, 1, 1], [], []>} : vector<16x32xf32>, vector<32x32xf32>, vector<16x32xf32> -> vector<16x32xf32>
    %9 = arith.addf %3, %8 : vector<16x32xf32>
    %c0_8 = arith.constant 0 : index
    %c0_9 = arith.constant 0 : index
    %10 = vector.load %arg8[%c0_8, %c0_9] : memref<16x32xf32, #tpu.memory_space<vmem>>, vector<16x32xf32>
    tpu.vector_store %arg8[%c0_8, %c0_9], %9 {strides = array<i32>} : memref<16x32xf32, #tpu.memory_space<vmem>>, vector<16x32xf32>,
    %c0_i32_10 = arith.constant 0 : i32
    %11 = arith.cmpi eq, %arg3, %c0_i32_10 : i32
    %12 = arith.extui %11 : i1 to i32
    %c0_i32_11 = arith.constant 0 : i32
    %13 = arith.cmpi ne, %12, %c0_i32_11 : i32
    scf.if %13 {
      %c0_12 = arith.constant 0 : index
      %c0_13 = arith.constant 0 : index
      %14 = vector.load %arg8[%c0_12, %c0_13] : memref<16x32xf32, #tpu.memory_space<vmem>>, vector<16x32xf32>
      %c0_14 = arith.constant 0 : index
      %c0_15 = arith.constant 0 : index
      %c0_16 = arith.constant 0 : index
      %15 = vector.load %arg6[%c0_14, %c0_15, %c0_16] : memref<1x1x32xf32, #tpu.memory_space<vmem>>, vector<1x1x32xf32>
      %16 = vector.shape_cast %15 : vector<1x1x32xf32> to vector<1x32xf32>
      %17 = vector.broadcast %16 : vector<1x32xf32> to vector<16x32xf32>
      %18 = arith.addf %14, %17 : vector<16x32xf32>
      %c0_17 = arith.constant 0 : index
      %c0_18 = arith.constant 0 : index
      %c0_19 = arith.constant 0 : index
      %19 = vector.load %arg7[%c0_17, %c0_18, %c0_19] : memref<1x16x32xf32, #tpu.memory_space<vmem>>, vector<1x16x32xf32>
      %20 = vector.shape_cast %19 : vector<1x16x32xf32> to vector<16x32xf32>
      %21 = vector.shape_cast %18 : vector<16x32xf32> to vector<1x16x32xf32>
      tpu.vector_store %arg7[%c0_17, %c0_18, %c0_19], %21 {strides = array<i32>} : memref<1x16x32xf32, #tpu.memory_space<vmem>>, vector<1x16x32xf32>,
    } else {
    }
    return
  }
  func.func @transform_0(%arg0: i32, %arg1: i32, %arg2: i32, %arg3: i32) -> (i32, i32, i32) {
    %c0_i32 = arith.constant 0 : i32
    return %arg0, %arg1, %arg3 : i32, i32, i32
  }
  func.func @transform_1(%arg0: i32, %arg1: i32, %arg2: i32, %arg3: i32) -> (i32, i32, i32) {
    %c0_i32 = arith.constant 0 : i32
    return %arg0, %arg3, %arg2 : i32, i32, i32
  }
  func.func @transform_2(%arg0: i32, %arg1: i32, %arg2: i32, %arg3: i32) -> (i32, i32, i32) {
    %c0_i32 = arith.constant 0 : i32
    %c0_i32_0 = arith.constant 0 : i32
    return %arg0, %c0_i32, %arg2 : i32, i32, i32
  }
  func.func @transform_3(%arg0: i32, %arg1: i32, %arg2: i32, %arg3: i32) -> (i32, i32, i32) {
    %c0_i32 = arith.constant 0 : i32
    return %arg0, %arg1, %arg2 : i32, i32, i32
  }
}

</mosaic_0001>

<llo_original>
// kernel: multi_head_attention.5
$region0: #{multi_head_attention.5}
  #allocation0 [shape = 'u32[]', space=smem, size = 0x4, offset = 0x4, fixed_abs, tag = 'smem constant byte address 0x4 - core index']
  #allocation1 [shape = 'u32[144,128]{1,0:T(1,128)}', space=vmem, size = 0x12000, scoped, tag = 'internal scratch']
  #allocation2 [shape = 'f32[16,32]{1,0:T(8,128)}', space=vmem, size = 0x2000, scoped, tag = 'scratch operand']
  %s0 = inlined_call_operand.vmem [shape: f32[1,16,32], index: 0, kind: input, shape index: {}]
  %s1 = inlined_call_operand.vmem [shape: f32[1,32,32], index: 1, kind: input, shape index: {}]
  %s2 = inlined_call_operand.vmem [shape: f32[1,1,32], index: 2, kind: input, shape index: {}]
  %s3 = inlined_call_operand.hbm [shape: f32[1,16,32], index: 3, kind: output, shape index: {}]
  %s4 = sld [smem:[#allocation0]]
  $region30: #{multi_head_attention.5} parent=0
    _
  %s6 = ssub.s32 1, %s4
  %s7 = scalar_select 0, %s6, %s4
  $region1: #{multi_head_attention.5} parent=0
    #allocation3 [shape = 'u8[8192]{0}', space=vmem, size = 0x2000, scoped, tag = 'output window, operand 0, single buffered']
    #allocation4 [shape = 's32[1]{0}', space=sflag, size = 0x4, scoped, tag = 'scoped memory for multi_head_attention.5']
    %8 = vsyncpa [#allocation4], 0
    // Predicated region
    $region2: #{multi_head_attention.5} parent=1 // pred_check
      _
    $region3: #{multi_head_attention.5} parent=1 // pred_check_branch
      %10 = sbr.rel (0) target = $region5
    $region4: #{multi_head_attention.5} parent=1 // pred_region
      _
    $region5: #{multi_head_attention.5} parent=1 // pred_fallthru
      _
    // Predicated region
    $region6: #{multi_head_attention.5} parent=1 // pred_check
      _
    $region7: #{multi_head_attention.5} parent=1 // pred_check_branch
      %12 = sbr.rel (0) target = $region9
    $region8: #{multi_head_attention.5} parent=1 // pred_region
      _
    $region9: #{multi_head_attention.5} parent=1 // pred_fallthru
      _
    // Predicated region
    $region10: #{multi_head_attention.5} parent=1 // pred_check
      _
    $region11: #{multi_head_attention.5} parent=1 // pred_check_branch
      %14 = sbr.rel (0) target = $region13
    $region12: #{multi_head_attention.5} parent=1 // pred_region
      _
    $region13: #{multi_head_attention.5} parent=1 // pred_fallthru
      _
    %p15 = scmp.eq.s32.totalorder 0, 0
    // Predicated region
    $region14: #{multi_head_attention.5} parent=1 // pred_check
      %p16 = pneg %p15
    $region15: #{multi_head_attention.5} parent=1 // pred_check_branch
      %18 = sbr.rel (%p16) target = $region17
    $region16: #{multi_head_attention.5} parent=1 // pred_region
      %vm19 = vcmask 261120
      %20 = vst.msk [vmem:[#allocation2] sm:$0xff] %vm19, 0.0
      %21 = vst.msk [vmem:[#allocation2 + $0x8] sm:$0xff] %vm19, 0.0
    $region17: #{multi_head_attention.5} parent=1 // pred_fallthru
      _
    %v22 = vld [vmem:[#allocation2] sm:$0xff]
    %v23 = vld [vmem:[#allocation2 + $0x8] sm:$0xff]
    %v24 = vld [vmem:[%s0] sm:$0xff]
    %v25 = vld [vmem:[%s0 + $0x8] sm:$0xff]
    %v26 = vld [vmem:[%s1] sm:$0xff]
    %v27 = vld [vmem:[%s1 + $0x8] sm:$0xff]
    %v28 = vld [vmem:[%s1 + $0x10] sm:$0xff]
    %v29 = vld [vmem:[%s1 + $0x18] sm:$0xff]
    %vm30 = vcmask 261120
    %v32 = vsel %vm30, %v24, 0
    %v35 = vsel %vm30, %v25, 0
    %37 = vmatprep.subr.mxu0 0.0
    %38 = vmatpush1.msra.mxu0 0.0
    %39 = vmatprep.subr.mxu0 0.0
    %40 = vmatpush1.msra.mxu0 0.0
    %41 = vmatprep.subr.mxu0 0.0
    %42 = vmatpush1.msra.mxu0 0.0
    %43 = vmatprep.subr.mxu0 0.0
    %44 = vmatpush1.msra.mxu0 0.0
    %45 = vmatprep.subr.mxu0 0.0
    %46 = vmatpush1.msra.mxu0 0.0
    %47 = vmatprep.subr.mxu0 0.0
    %48 = vmatpush1.msra.mxu0 0.0
    %49 = vmatprep.subr.mxu0 0.0
    %50 = vmatpush1.msra.mxu0 0.0
    %51 = vmatprep.subr.mxu0 0.0
    %52 = vmatpush1.msra.mxu0 0.0
    %53 = vmatprep.subr.mxu0 0.0
    %54 = vmatpush1.msra.mxu0 0.0
    %55 = vmatprep.subr.mxu0 0.0
    %56 = vmatpush1.msra.mxu0 0.0
    %57 = vmatprep.subr.mxu0 0.0
    %58 = vmatpush1.msra.mxu0 0.0
    %59 = vmatprep.subr.mxu0 0.0
    %60 = vmatpush1.msra.mxu0 0.0
    %61 = vmatprep.subr.mxu0 0.0
    %62 = vmatpush1.msra.mxu0 %v29
    %63 = vmatprep.subr.mxu0 0.0
    %64 = vmatpush1.msra.mxu0 %v28
    %65 = vmatprep.subr.mxu0 0.0
    %66 = vmatpush1.msra.mxu0 %v27
    %67 = vmatprep.subr.mxu0 0.0
    %68 = vmatpush1.msra.mxu0 %v26
    %69 = vmatprep.subr.mxu0 0.0
    %70 = vmatpush2.msra.mxu0 0.0
    %71 = vmatprep.subr.mxu0 0.0
    %72 = vmatpush2.msra.mxu0 0.0
    %73 = vmatprep.subr.mxu0 0.0
    %74 = vmatpush2.msra.mxu0 0.0
    %75 = vmatprep.subr.mxu0 0.0
    %76 = vmatpush2.msra.mxu0 0.0
    %77 = vmatprep.subr.mxu0 0.0
    %78 = vmatpush2.msra.mxu0 0.0
    %79 = vmatprep.subr.mxu0 0.0
    %80 = vmatpush2.msra.mxu0 0.0
    %81 = vmatprep.subr.mxu0 0.0
    %82 = vmatpush2.msra.mxu0 0.0
    %83 = vmatprep.subr.mxu0 0.0
    %84 = vmatpush2.msra.mxu0 0.0
    %85 = vmatprep.subr.mxu0 0.0
    %86 = vmatpush2.msra.mxu0 0.0
    %87 = vmatprep.subr.mxu0 0.0
    %88 = vmatpush2.msra.mxu0 0.0
    %89 = vmatprep.subr.mxu0 0.0
    %90 = vmatpush2.msra.mxu0 0.0
    %91 = vmatprep.subr.mxu0 0.0
    %92 = vmatpush2.msra.mxu0 0.0
    %93 = vmatprep.subr.mxu0 0.0
    %94 = vmatpush2.msra.mxu0 0.0
    %95 = vmatprep.subr.mxu0 0.0
    %96 = vmatpush2.msra.mxu0 0.0
    %97 = vmatprep.subr.mxu0 0.0
    %98 = vmatpush2.msra.mxu0 0.0
    %99 = vmatprep.subr.mxu0 0.0
    %100 = vmatpush2.msra.mxu0 0.0
    %101 = vmatprep.mubr.f32.mxu0 0.0
    %102 = vmatmul.mubr.f32.gmra.mxu0 %v32
    %v103 = vpop.f32.mrf.mxu0
    %v104 = vadd.f32 0.0, %v103
    %v105 = vpop.f32.mrf.mxu0
    %106 = vmatprep.mubr.f32.mxu0 0.0
    %107 = vmatmul.mubr.f32.gmra.mxu0 %v35
    %v108 = vpop.f32.mrf.mxu0
    %v109 = vadd.f32 0.0, %v108
    %v110 = vpop.f32.mrf.mxu0
    %111 = vdwg.mxu0
    %v112 = vadd.f32 %v22, %v104
    %v113 = vadd.f32 %v23, %v109
    %114 = vst.msk [vmem:[#allocation2] sm:$0xff] %vm30, %v112
    %115 = vst.msk [vmem:[#allocation2 + $0x8] sm:$0xff] %vm30, %v113
    // Predicated region
    $region18: #{multi_head_attention.5} parent=1 // pred_check
      %p116 = pneg %p15
    $region19: #{multi_head_attention.5} parent=1 // pred_check_branch
      %118 = sbr.rel (%p116) target = $region21
    $region20: #{multi_head_attention.5} parent=1 // pred_region
      %v119 = vld [vmem:[#allocation2] sm:$0xff]
      %v120 = vld [vmem:[#allocation2 + $0x8] sm:$0xff]
      %v121 = vld [vmem:[%s2] sm:$0x1]
      %v123 = vlaneseq
      %v124 = vshrl.u32 %v123, 7
      %v125 = vsub.s32 0, %v124
      %v126 = vrot.slane %v121, %v125
      %v128 = vadd.f32 %v119, %v126
      %v129 = vadd.f32 %v120, %v126
      %130 = vst.msk [vmem:[#allocation3] sm:$0xff] %vm30, %v128
      %131 = vst.msk [vmem:[#allocation3 + $0x8] sm:$0xff] %vm30, %v129
    $region21: #{multi_head_attention.5} parent=1 // pred_fallthru
      _
    // Predicated region
    $region22: #{multi_head_attention.5} parent=1 // pred_check
      _
    $region23: #{multi_head_attention.5} parent=1 // pred_check_branch
      %133 = sbr.rel (0) target = $region25
    $region24: #{multi_head_attention.5} parent=1 // pred_region
      %s135 = ssub.s32 256, 256
      %136 = vsyncadd [#allocation4], %s135
      %s137 = sshll.u32 [#allocation3], 4
      %s138 = int_to_ptr.vmem [resolvable:$true] %s137
      %143 = dma.vmem_to_hbm [thread:$0]  %s138, 256, %s3, [#allocation4], 128, 128, 8
    $region25: #{multi_head_attention.5} parent=1 // pred_fallthru
      _
    // Predicated region
    $region26: #{multi_head_attention.5} parent=1 // pred_check
      _
    $region27: #{multi_head_attention.5} parent=1 // pred_check_branch
      %145 = sbr.rel (0) target = $region29
    $region28: #{multi_head_attention.5} parent=1 // pred_region
      %146 = dma.done [#allocation4], 256
    $region29: #{multi_head_attention.5} parent=1 // pred_fallthru
      _
    %147 = vsyncpa [#allocation4], 1

// kernel: multi_head_attention.3
$region0: #{multi_head_attention.3}
  #allocation0 [shape = 'u32[]', space=smem, size = 0x4, offset = 0x4, fixed_abs, tag = 'smem constant byte address 0x4 - core index']
  #allocation1 [shape = 'u32[144,128]{1,0:T(1,128)}', space=vmem, size = 0x12000, scoped, tag = 'internal scratch']
  #allocation2 [shape = 'f32[16,32]{1,0:T(8,128)}', space=vmem, size = 0x2000, scoped, tag = 'scratch operand']
  %s0 = inlined_call_operand.vmem [shape: f32[3,16,32], index: 0, kind: input, shape index: {}]
  %s1 = inlined_call_operand.vmem [shape: f32[3,32,32], index: 1, kind: input, shape index: {}]
  %s2 = inlined_call_operand.vmem [shape: f32[3,1,32], index: 2, kind: input, shape index: {}]
  %s3 = inlined_call_operand.vmem [shape: f32[3,16,32], index: 3, kind: output, shape index: {}]
  %s4 = sld [smem:[#allocation0]]
  $region53: #{multi_head_attention.3} parent=0
    _
  %s6 = ssub.s32 1, %s4
  %s7 = scalar_select 0, %s6, %s4
  loop: start=0, step=1, limit=5
  $region2: #{multi_head_attention.3} parent=0 // loop_pre_header
    _
  $region3: #{multi_head_attention.3} parent=0 // loop_header
    %s9 = sphi 0, %s13
    %p10 = scmp.ge.s32.totalorder %s9, 5
    %s16 = sphi 0, %s42
    %s17 = sphi 0, %s38
    %s18 = sphi 0, %s34
    %s19 = sphi 0, %s30
    %s20 = sphi 0, %s16
    %s21 = sphi 0, %s17
    %s22 = sphi 0, %s18
    %s23 = sphi 0, %s19
    %s24 = sphi 0, %s20
    %s25 = sphi 0, %s21
    %s26 = sphi 0, %s22
    %s27 = sphi 0, %s23
    %s49 = sphi 0, %s51
    %s52 = sphi 0, %s49
    %s53 = sphi 0, %s52
    %s69 = sphi 0, %s53
    %s79 = sphi 0, %s81
    %s82 = sphi 0, %s79
    %s83 = sphi 0, %s82
    %s99 = sphi 0, %s83
    %s107 = sphi 0, %s109
    %s110 = sphi 0, %s107
    %s111 = sphi 0, %s110
    %s127 = sphi 0, %s111
    %s137 = sphi 0, %s139
    %s140 = sphi 0, %s137
    %s141 = sphi 0, %s140
    %s157 = sphi 0, %s141
  $region4: #{multi_head_attention.3} parent=0 // loop_header_branch
    %12 = sbr.rel (%p10) target = $region8
  $region5: #{multi_head_attention.3} parent=0 // loop_body
    %s14 = ssub.s32 %s9, 1
    %s15 = ssub.s32 %s9, 2
    %s28 = sadd.s32 1, %s19
    %p29 = scmp.ge.s32.totalorder %s28, 1
    %s30 = scalar_select %p29, 0, %s28
    %s31 = sadd.s32 1, %s18
    %s32 = scalar_select %p29, %s31, %s18
    %p33 = scmp.ge.s32.totalorder %s32, 1
    %s34 = scalar_select %p33, 0, %s32
    %s35 = sadd.s32 1, %s17
    %s36 = scalar_select %p33, %s35, %s17
    %p37 = scmp.ge.s32.totalorder %s36, 1
    %s38 = scalar_select %p37, 0, %s36
    %s39 = sadd.s32 1, %s16
    %s40 = scalar_select %p37, %s39, %s16
    %p41 = scmp.ge.s32.totalorder %s40, 3
    %s42 = scalar_select %p41, 0, %s40
    %s43 = ssub.s32 %s16, %s42
    %s44 = ssub.s32 %s17, %s38
    %s45 = sor.u32 %s43, %s44
    %s46 = ssub.s32 %s19, %s30
    %s47 = sor.u32 %s45, %s46
    %p48 = scmp.eq.s32.totalorder %s47, 0
    %s50 = sadd.s32 %s49, 1
    %s51 = scalar_select %p48, %s49, %s50
    %p54 = pneg %p48
    %p55 = scmp.eq.s32.totalorder %s9, 2
    %p56 = por %p54, %p55
    %p57 = scmp.ne.s32.totalorder %s49, %s52
    %p58 = scmp.eq.s32.totalorder %s9, 0
    %p59 = por %p57, %p58
    %p60 = scmp.ne.s32.totalorder %s49, %s52
    %p61 = scmp.eq.s32.totalorder %s14, 2
    %p62 = por %p60, %p61
    %p63 = scmp.ne.s32.totalorder %s52, %s53
    %p64 = scmp.eq.s32.totalorder %s14, 0
    %p65 = por %p63, %p64
    %p66 = scmp.ne.s32.totalorder %s52, %s53
    %p67 = scmp.eq.s32.totalorder %s15, 2
    %p68 = por %p66, %p67
    %p70 = scmp.ne.s32.totalorder %s53, %s69
    %p71 = scmp.eq.s32.totalorder %s15, 0
    %p72 = por %p70, %p71
    %s73 = ssub.s32 %s16, %s42
    %s74 = ssub.s32 %s19, %s30
    %s75 = sor.u32 %s73, %s74
    %s76 = ssub.s32 %s18, %s34
    %s77 = sor.u32 %s75, %s76
    %p78 = scmp.eq.s32.totalorder %s77, 0
    %s80 = sadd.s32 %s79, 1
    %s81 = scalar_select %p78, %s79, %s80
    %p84 = pneg %p78
    %p85 = scmp.eq.s32.totalorder %s9, 2
    %p86 = por %p84, %p85
    %p87 = scmp.ne.s32.totalorder %s79, %s82
    %p88 = scmp.eq.s32.totalorder %s9, 0
    %p89 = por %p87, %p88
    %p90 = scmp.ne.s32.totalorder %s79, %s82
    %p91 = scmp.eq.s32.totalorder %s14, 2
    %p92 = por %p90, %p91
    %p93 = scmp.ne.s32.totalorder %s82, %s83
    %p94 = scmp.eq.s32.totalorder %s14, 0
    %p95 = por %p93, %p94
    %p96 = scmp.ne.s32.totalorder %s82, %s83
    %p97 = scmp.eq.s32.totalorder %s15, 2
    %p98 = por %p96, %p97
    %p100 = scmp.ne.s32.totalorder %s83, %s99
    %p101 = scmp.eq.s32.totalorder %s15, 0
    %p102 = por %p100, %p101
    %s103 = ssub.s32 %s16, %s42
    %s104 = ssub.s32 %s18, %s34
    %s105 = sor.u32 %s103, %s104
    %p106 = scmp.eq.s32.totalorder %s105, 0
    %s108 = sadd.s32 %s107, 1
    %s109 = scalar_select %p106, %s107, %s108
    %p112 = pneg %p106
    %p113 = scmp.eq.s32.totalorder %s9, 2
    %p114 = por %p112, %p113
    %p115 = scmp.ne.s32.totalorder %s107, %s110
    %p116 = scmp.eq.s32.totalorder %s9, 0
    %p117 = por %p115, %p116
    %p118 = scmp.ne.s32.totalorder %s107, %s110
    %p119 = scmp.eq.s32.totalorder %s14, 2
    %p120 = por %p118, %p119
    %p121 = scmp.ne.s32.totalorder %s110, %s111
    %p122 = scmp.eq.s32.totalorder %s14, 0
    %p123 = por %p121, %p122
    %p124 = scmp.ne.s32.totalorder %s110, %s111
    %p125 = scmp.eq.s32.totalorder %s15, 2
    %p126 = por %p124, %p125
    %p128 = scmp.ne.s32.totalorder %s111, %s127
    %p129 = scmp.eq.s32.totalorder %s15, 0
    %p130 = por %p128, %p129
    %s131 = ssub.s32 %s16, %s42
    %s132 = ssub.s32 %s17, %s38
    %s133 = sor.u32 %s131, %s132
    %s134 = ssub.s32 %s18, %s34
    %s135 = sor.u32 %s133, %s134
    %p136 = scmp.eq.s32.totalorder %s135, 0
    %s138 = sadd.s32 %s137, 1
    %s139 = scalar_select %p136, %s137, %s138
    %p142 = pneg %p136
    %p143 = scmp.eq.s32.totalorder %s9, 2
    %p144 = por %p142, %p143
    %p145 = scmp.ne.s32.totalorder %s137, %s140
    %p146 = scmp.eq.s32.totalorder %s9, 0
    %p147 = por %p145, %p146
    %p148 = scmp.ne.s32.totalorder %s137, %s140
    %p149 = scmp.eq.s32.totalorder %s14, 2
    %p150 = por %p148, %p149
    %p151 = scmp.ne.s32.totalorder %s140, %s141
    %p152 = scmp.eq.s32.totalorder %s14, 0
    %p153 = por %p151, %p152
    %p154 = scmp.ne.s32.totalorder %s140, %s141
    %p155 = scmp.eq.s32.totalorder %s15, 2
    %p156 = por %p154, %p155
    %p158 = scmp.ne.s32.totalorder %s141, %s157
    %p159 = scmp.eq.s32.totalorder %s15, 0
    %p160 = por %p158, %p159
    %p161 = scmp.le.s32.totalorder 1, %s9
    %p162 = scmp.lt.s32.totalorder %s9, 4
    %p163 = pnand %p161, %p162
    %p164 = pneg %p163
    // Predicated region
    $region9: #{multi_head_attention.3} parent=5 // pred_check
      _
    $region10: #{multi_head_attention.3} parent=5 // pred_check_branch
      %166 = sbr.rel (%p163) target = $region12
    $region11: #{multi_head_attention.3} parent=5 // pred_region
      %s167 = ssub.s32 %s9, 1
    $region12: #{multi_head_attention.3} parent=5 // pred_fallthru
      _
    %p168 = scmp.lt.s32.totalorder %s9, 3
    // Predicated region
    $region13: #{multi_head_attention.3} parent=5 // pred_check
      %p169 = pneg %p168
    $region14: #{multi_head_attention.3} parent=5 // pred_check_branch
      %171 = sbr.rel (%p169) target = $region16
    $region15: #{multi_head_attention.3} parent=5 // pred_region
      // Predicated region
      $region17: #{multi_head_attention.3} parent=15 // pred_check
        %p172 = pneg %p59
      $region18: #{multi_head_attention.3} parent=15 // pred_check_branch
        %174 = sbr.rel (%p172) target = $region20
      $region19: #{multi_head_attention.3} parent=15 // pred_region
        %s175 = smul.u32 2, %s17
        %p176 = scmp.lt.s32.totalorder %s16, 2
        %s177 = scalar_select %p176, %s16, 2
        %p178 = scmp.lt.s32.totalorder %s175, 1
        %s179 = scalar_select %p178, %s175, 1
        %p180 = scmp.lt.s32.totalorder %s19, 0
        %s181 = scalar_select %p180, %s19, 0
        %s182 = sadd.s32 %s181, %s179
        %s183 = smul.addr %s177, 2
        %s184 = sadd.s32 %s182, %s183
        %s185 = smul.addr %s184, 8
        %s186 = scalar_lea.vmem %s0, %s185
        %s187 = smul.u32 2, %s17
      $region20: #{multi_head_attention.3} parent=15 // pred_fallthru
        _
      // Predicated region
      $region21: #{multi_head_attention.3} parent=15 // pred_check
        %p188 = pneg %p89
      $region22: #{multi_head_attention.3} parent=15 // pred_check_branch
        %190 = sbr.rel (%p188) target = $region24
      $region23: #{multi_head_attention.3} parent=15 // pred_region
        %s191 = smul.u32 4, %s19
        %p192 = scmp.lt.s32.totalorder %s16, 2
        %s193 = scalar_select %p192, %s16, 2
        %p194 = scmp.lt.s32.totalorder %s191, 3
        %s195 = scalar_select %p194, %s191, 3
        %p196 = scmp.lt.s32.totalorder %s18, 0
        %s197 = scalar_select %p196, %s18, 0
        %s198 = sadd.s32 %s197, %s195
        %s199 = smul.addr %s193, 4
        %s200 = sadd.s32 %s198, %s199
        %s201 = smul.addr %s200, 8
        %s202 = scalar_lea.vmem %s1, %s201
        %s203 = smul.u32 4, %s19
      $region24: #{multi_head_attention.3} parent=15 // pred_fallthru
        _
      // Predicated region
      $region25: #{multi_head_attention.3} parent=15 // pred_check
        %p204 = pneg %p117
      $region26: #{multi_head_attention.3} parent=15 // pred_check_branch
        %206 = sbr.rel (%p204) target = $region28
      $region27: #{multi_head_attention.3} parent=15 // pred_region
        %p207 = scmp.lt.s32.totalorder %s16, 2
        %s208 = scalar_select %p207, %s16, 2
        %p209 = scmp.lt.s32.totalorder %s18, 0
        %s210 = scalar_select %p209, %s18, 0
        %s211 = sadd.s32 %s210, %s208
        %s212 = scalar_lea.vmem %s2, %s211
      $region28: #{multi_head_attention.3} parent=15 // pred_fallthru
        _
    $region16: #{multi_head_attention.3} parent=5 // pred_fallthru
      _
    %p213 = scmp.le.s32.totalorder 1, %s9
    %p214 = scmp.lt.s32.totalorder %s9, 4
    %p215 = pnand %p213, %p214
    %p216 = pneg %p215
    // Predicated region
    $region29: #{multi_head_attention.3} parent=5 // pred_check
      _
    $region30: #{multi_head_attention.3} parent=5 // pred_check_branch
      %218 = sbr.rel (%p215) target = $region32
    $region31: #{multi_head_attention.3} parent=5 // pred_region
      %s219 = ssub.s32 %s9, 1
      %s220 = smul.u32 2, %s21
      %p221 = scmp.lt.s32.totalorder %s20, 2
      %s222 = scalar_select %p221, %s20, 2
      %p223 = scmp.lt.s32.totalorder %s220, 1
      %s224 = scalar_select %p223, %s220, 1
      %p225 = scmp.lt.s32.totalorder %s23, 0
      %s226 = scalar_select %p225, %s23, 0
      %s227 = sadd.s32 %s226, %s224
      %s228 = smul.addr %s222, 2
      %s229 = sadd.s32 %s227, %s228
      %s230 = smul.addr %s229, 8
      %s231 = scalar_lea.vmem %s0, %s230
      %p232 = pneg %p65
      %p233 = pneg %p62
      %s234 = smul.u32 4, %s23
      %p235 = scmp.lt.s32.totalorder %s20, 2
      %s236 = scalar_select %p235, %s20, 2
      %p237 = scmp.lt.s32.totalorder %s234, 3
      %s238 = scalar_select %p237, %s234, 3
      %p239 = scmp.lt.s32.totalorder %s22, 0
      %s240 = scalar_select %p239, %s22, 0
      %s241 = sadd.s32 %s240, %s238
      %s242 = smul.addr %s236, 4
      %s243 = sadd.s32 %s241, %s242
      %s244 = smul.addr %s243, 8
      %s245 = scalar_lea.vmem %s1, %s244
      %p246 = pneg %p95
      %p247 = pneg %p92
      %p248 = scmp.lt.s32.totalorder %s20, 2
      %s249 = scalar_select %p248, %s20, 2
      %p250 = scmp.lt.s32.totalorder %s22, 0
      %s251 = scalar_select %p250, %s22, 0
      %s252 = sadd.s32 %s251, %s249
      %s253 = scalar_lea.vmem %s2, %s252
      %p254 = pneg %p123
      %p255 = pneg %p120
      %p256 = pneg %p153
      %p257 = pneg %p150
      %s258 = smul.u32 2, %s21
      %p259 = scmp.lt.s32.totalorder %s20, 2
      %s260 = scalar_select %p259, %s20, 2
      %p261 = scmp.lt.s32.totalorder %s258, 1
      %s262 = scalar_select %p261, %s258, 1
      %p263 = scmp.lt.s32.totalorder %s22, 0
      %s264 = scalar_select %p263, %s22, 0
      %s265 = sadd.s32 %s264, %s262
      %s266 = smul.addr %s260, 2
      %s267 = sadd.s32 %s265, %s266
      %s268 = smul.addr %s267, 8
      %s269 = scalar_lea.vmem %s3, %s268
      %s270 = smul.u32 2, %s21
      %p271 = scmp.lt.s32.totalorder %s20, 2
      %s272 = scalar_select %p271, %s20, 2
      %p273 = scmp.lt.s32.totalorder %s270, 1
      %s274 = scalar_select %p273, %s270, 1
      %p275 = scmp.lt.s32.totalorder %s23, 0
      %s276 = scalar_select %p275, %s23, 0
      %s277 = sadd.s32 %s276, %s274
      %s278 = smul.addr %s272, 2
      %s279 = sadd.s32 %s277, %s278
      %s280 = smul.addr %s279, 8
      %s281 = scalar_lea.vmem %s0, %s280
      %s282 = smul.u32 2, %s21
      %s283 = smul.u32 4, %s23
      %p284 = scmp.lt.s32.totalorder %s20, 2
      %s285 = scalar_select %p284, %s20, 2
      %p286 = scmp.lt.s32.totalorder %s283, 3
      %s287 = scalar_select %p286, %s283, 3
      %p288 = scmp.lt.s32.totalorder %s22, 0
      %s289 = scalar_select %p288, %s22, 0
      %s290 = sadd.s32 %s289, %s287
      %s291 = smul.addr %s285, 4
      %s292 = sadd.s32 %s290, %s291
      %s293 = smul.addr %s292, 8
      %s294 = scalar_lea.vmem %s1, %s293
      %s295 = smul.u32 4, %s23
      %p296 = scmp.lt.s32.totalorder %s20, 2
      %s297 = scalar_select %p296, %s20, 2
      %p298 = scmp.lt.s32.totalorder %s22, 0
      %s299 = scalar_select %p298, %s22, 0
      %s300 = sadd.s32 %s299, %s297
      %s301 = scalar_lea.vmem %s2, %s300
      %s302 = smul.u32 2, %s21
      %p303 = scmp.lt.s32.totalorder %s20, 2
      %s304 = scalar_select %p303, %s20, 2
      %p305 = scmp.lt.s32.totalorder %s302, 1
      %s306 = scalar_select %p305, %s302, 1
      %p307 = scmp.lt.s32.totalorder %s22, 0
      %s308 = scalar_select %p307, %s22, 0
      %s309 = sadd.s32 %s308, %s306
      %s310 = smul.addr %s304, 2
      %s311 = sadd.s32 %s309, %s310
      %s312 = smul.addr %s311, 8
      %s313 = scalar_lea.vmem %s3, %s312
      %s314 = smul.u32 2, %s21
      %p315 = scmp.eq.s32.totalorder %s23, 0
      // Predicated region
      $region33: #{multi_head_attention.3} parent=31 // pred_check
        %p316 = pneg %p315
      $region34: #{multi_head_attention.3} parent=31 // pred_check_branch
        %318 = sbr.rel (%p316) target = $region36
      $region35: #{multi_head_attention.3} parent=31 // pred_region
        %vm319 = vcmask 261120
        %320 = vst.msk [vmem:[#allocation2] sm:$0xff] %vm319, 0.0
        %321 = vst.msk [vmem:[#allocation2 + $0x8] sm:$0xff] %vm319, 0.0
      $region36: #{multi_head_attention.3} parent=31 // pred_fallthru
        _
      %v322 = vld [vmem:[#allocation2] sm:$0xff]
      %v323 = vld [vmem:[#allocation2 + $0x8] sm:$0xff]
      %v324 = vld [vmem:[%s281] sm:$0xff]
      %v325 = vld [vmem:[%s281 + $0x8] sm:$0xff]
      %v326 = vld [vmem:[%s294] sm:$0xff]
      %v327 = vld [vmem:[%s294 + $0x8] sm:$0xff]
      %v328 = vld [vmem:[%s294 + $0x10] sm:$0xff]
      %v329 = vld [vmem:[%s294 + $0x18] sm:$0xff]
      %vm330 = vcmask 261120
      %v332 = vsel %vm330, %v324, 0
      %v335 = vsel %vm330, %v325, 0
      %337 = vmatprep.subr.mxu0 0.0
      %338 = vmatpush1.msra.mxu0 0.0
      %339 = vmatprep.subr.mxu0 0.0
      %340 = vmatpush1.msra.mxu0 0.0
      %341 = vmatprep.subr.mxu0 0.0
      %342 = vmatpush1.msra.mxu0 0.0
      %343 = vmatprep.subr.mxu0 0.0
      %344 = vmatpush1.msra.mxu0 0.0
      %345 = vmatprep.subr.mxu0 0.0
      %346 = vmatpush1.msra.mxu0 0.0
      %347 = vmatprep.subr.mxu0 0.0
      %348 = vmatpush1.msra.mxu0 0.0
      %349 = vmatprep.subr.mxu0 0.0
      %350 = vmatpush1.msra.mxu0 0.0
      %351 = vmatprep.subr.mxu0 0.0
      %352 = vmatpush1.msra.mxu0 0.0
      %353 = vmatprep.subr.mxu0 0.0
      %354 = vmatpush1.msra.mxu0 0.0
      %355 = vmatprep.subr.mxu0 0.0
      %356 = vmatpush1.msra.mxu0 0.0
      %357 = vmatprep.subr.mxu0 0.0
      %358 = vmatpush1.msra.mxu0 0.0
      %359 = vmatprep.subr.mxu0 0.0
      %360 = vmatpush1.msra.mxu0 0.0
      %361 = vmatprep.subr.mxu0 0.0
      %362 = vmatpush1.msra.mxu0 %v329
      %363 = vmatprep.subr.mxu0 0.0
      %364 = vmatpush1.msra.mxu0 %v328
      %365 = vmatprep.subr.mxu0 0.0
      %366 = vmatpush1.msra.mxu0 %v327
      %367 = vmatprep.subr.mxu0 0.0
      %368 = vmatpush1.msra.mxu0 %v326
      %369 = vmatprep.subr.mxu0 0.0
      %370 = vmatpush2.msra.mxu0 0.0
      %371 = vmatprep.subr.mxu0 0.0
      %372 = vmatpush2.msra.mxu0 0.0
      %373 = vmatprep.subr.mxu0 0.0
      %374 = vmatpush2.msra.mxu0 0.0
      %375 = vmatprep.subr.mxu0 0.0
      %376 = vmatpush2.msra.mxu0 0.0
      %377 = vmatprep.subr.mxu0 0.0
      %378 = vmatpush2.msra.mxu0 0.0
      %379 = vmatprep.subr.mxu0 0.0
      %380 = vmatpush2.msra.mxu0 0.0
      %381 = vmatprep.subr.mxu0 0.0
      %382 = vmatpush2.msra.mxu0 0.0
      %383 = vmatprep.subr.mxu0 0.0
      %384 = vmatpush2.msra.mxu0 0.0
      %385 = vmatprep.subr.mxu0 0.0
      %386 = vmatpush2.msra.mxu0 0.0
      %387 = vmatprep.subr.mxu0 0.0
      %388 = vmatpush2.msra.mxu0 0.0
      %389 = vmatprep.subr.mxu0 0.0
      %390 = vmatpush2.msra.mxu0 0.0
      %391 = vmatprep.subr.mxu0 0.0
      %392 = vmatpush2.msra.mxu0 0.0
      %393 = vmatprep.subr.mxu0 0.0
      %394 = vmatpush2.msra.mxu0 0.0
      %395 = vmatprep.subr.mxu0 0.0
      %396 = vmatpush2.msra.mxu0 0.0
      %397 = vmatprep.subr.mxu0 0.0
      %398 = vmatpush2.msra.mxu0 0.0
      %399 = vmatprep.subr.mxu0 0.0
      %400 = vmatpush2.msra.mxu0 0.0
      %401 = vmatprep.mubr.f32.mxu0 0.0
      %402 = vmatmul.mubr.f32.gmra.mxu0 %v332
      %v403 = vpop.f32.mrf.mxu0
      %v404 = vadd.f32 0.0, %v403
      %v405 = vpop.f32.mrf.mxu0
      %406 = vmatprep.mubr.f32.mxu0 0.0
      %407 = vmatmul.mubr.f32.gmra.mxu0 %v335
      %v408 = vpop.f32.mrf.mxu0
      %v409 = vadd.f32 0.0, %v408
      %v410 = vpop.f32.mrf.mxu0
      %411 = vdwg.mxu0
      %v412 = vadd.f32 %v322, %v404
      %v413 = vadd.f32 %v323, %v409
      %414 = vst.msk [vmem:[#allocation2] sm:$0xff] %vm330, %v412
      %415 = vst.msk [vmem:[#allocation2 + $0x8] sm:$0xff] %vm330, %v413
      // Predicated region
      $region37: #{multi_head_attention.3} parent=31 // pred_check
        %p416 = pneg %p315
      $region38: #{multi_head_attention.3} parent=31 // pred_check_branch
        %418 = sbr.rel (%p416) target = $region40
      $region39: #{multi_head_attention.3} parent=31 // pred_region
        %v419 = vld [vmem:[#allocation2] sm:$0xff]
        %v420 = vld [vmem:[#allocation2 + $0x8] sm:$0xff]
        %v421 = vld [vmem:[%s301] sm:$0x1]
        %v423 = vlaneseq
        %v424 = vshrl.u32 %v423, 7
        %v425 = vsub.s32 0, %v424
        %v426 = vrot.slane %v421, %v425
        %v428 = vadd.f32 %v419, %v426
        %v429 = vadd.f32 %v420, %v426
        %430 = vst.msk [vmem:[%s313] sm:$0xff] %vm330, %v428
        %431 = vst.msk [vmem:[%s313 + $0x8] sm:$0xff] %vm330, %v429
      $region40: #{multi_head_attention.3} parent=31 // pred_fallthru
        _
      %s432 = smul.u32 2, %s21
      %p433 = scmp.lt.s32.totalorder %s20, 2
      %s434 = scalar_select %p433, %s20, 2
      %p435 = scmp.lt.s32.totalorder %s432, 1
      %s436 = scalar_select %p435, %s432, 1
      %p437 = scmp.lt.s32.totalorder %s22, 0
      %s438 = scalar_select %p437, %s22, 0
      %s439 = sadd.s32 %s438, %s436
      %s440 = smul.addr %s434, 2
      %s441 = sadd.s32 %s439, %s440
      %s442 = smul.addr %s441, 8
      %s443 = scalar_lea.vmem %s3, %s442
      // Predicated region
      $region41: #{multi_head_attention.3} parent=31 // pred_check
        %p444 = pneg %p150
      $region42: #{multi_head_attention.3} parent=31 // pred_check_branch
        %446 = sbr.rel (%p444) target = $region44
      $region43: #{multi_head_attention.3} parent=31 // pred_region
        %s447 = smul.u32 2, %s21
      $region44: #{multi_head_attention.3} parent=31 // pred_fallthru
        _
    $region32: #{multi_head_attention.3} parent=5 // pred_fallthru
      _
    %p448 = scmp.le.s32.totalorder 2, %s9
    // Predicated region
    $region45: #{multi_head_attention.3} parent=5 // pred_check
      %p449 = pneg %p448
    $region46: #{multi_head_attention.3} parent=5 // pred_check_branch
      %451 = sbr.rel (%p449) target = $region48
    $region47: #{multi_head_attention.3} parent=5 // pred_region
      %s452 = ssub.s32 %s9, 2
      // Predicated region
      $region49: #{multi_head_attention.3} parent=47 // pred_check
        %p453 = pneg %p156
      $region50: #{multi_head_attention.3} parent=47 // pred_check_branch
        %455 = sbr.rel (%p453) target = $region52
      $region51: #{multi_head_attention.3} parent=47 // pred_region
        %s456 = smul.u32 2, %s25
        %p457 = scmp.lt.s32.totalorder %s24, 2
        %s458 = scalar_select %p457, %s24, 2
        %p459 = scmp.lt.s32.totalorder %s456, 1
        %s460 = scalar_select %p459, %s456, 1
        %p461 = scmp.lt.s32.totalorder %s26, 0
        %s462 = scalar_select %p461, %s26, 0
        %s463 = sadd.s32 %s462, %s460
        %s464 = smul.addr %s458, 2
        %s465 = sadd.s32 %s463, %s464
        %s466 = smul.addr %s465, 8
        %s467 = scalar_lea.vmem %s3, %s466
      $region52: #{multi_head_attention.3} parent=47 // pred_fallthru
        _
    $region48: #{multi_head_attention.3} parent=5 // pred_fallthru
      _
  $region6: #{multi_head_attention.3} parent=0 // loop_footer
    %s13 = sadd.s32 1, %s9
  $region7: #{multi_head_attention.3} parent=0 // loop_footer_branch
    %8 = sbr.rel target = $region3
  $region8: #{multi_head_attention.3} parent=0 // loop_exit
    _

// kernel: multi_head_attention.4
$region0: #{multi_head_attention.4}
  #allocation0 [shape = 'u32[]', space=smem, size = 0x4, offset = 0x4, fixed_abs, tag = 'smem constant byte address 0x4 - core index']
  #allocation1 [shape = 'u32[144,128]{1,0:T(1,128)}', space=vmem, size = 0x12000, scoped, tag = 'internal scratch']
  #allocation2 [shape = 'f32[4,8,1]{2,1,0:T(8,128)}', space=vmem, size = 0x4000, scoped, tag = 'scratch operand']
  #allocation3 [shape = 'f32[4,8,1]{2,1,0:T(8,128)}', space=vmem, size = 0x4000, scoped, tag = 'scratch operand']
  #allocation4 [shape = 'f32[8,32]{1,0:T(8,128)}', space=vmem, size = 0x1000, scoped, tag = 'scratch operand']
  %s0 = inlined_call_operand.vmem [shape: f32[3,16,32], index: 0, kind: input, shape index: {}, may-alias: {0,1,2}]
  %s1 = inlined_call_operand.vmem [shape: f32[3,16,32], index: 1, kind: input, shape index: {}, may-alias: {0,1,2}]
  %s2 = inlined_call_operand.vmem [shape: f32[3,16,32], index: 2, kind: input, shape index: {}, may-alias: {0,1,2}]
  %s3 = inlined_call_operand.vmem [shape: f32[16,32], index: 3, kind: output, shape index: {}]
  %s4 = sld [smem:[#allocation0]]
  $region53: #{multi_head_attention.4} parent=0
    _
  %s6 = ssub.s32 1, %s4
  %s7 = scalar_select 0, %s6, %s4
  loop: start=0, step=1, limit=4
  $region2: #{multi_head_attention.4} parent=0 // loop_pre_header
    _
  $region3: #{multi_head_attention.4} parent=0 // loop_header
    %s9 = sphi 0, %s13
    %p10 = scmp.ge.s32.totalorder %s9, 4
    %s16 = sphi 0, %s35
    %s17 = sphi 0, %s31
    %s18 = sphi 0, %s27
    %s19 = sphi 0, %s16
    %s20 = sphi 0, %s17
    %s21 = sphi 0, %s18
    %s22 = sphi 0, %s19
    %s23 = sphi 0, %s20
    %s24 = sphi 0, %s21
    %s40 = sphi 0, %s42
    %s43 = sphi 0, %s40
    %s44 = sphi 0, %s43
    %s60 = sphi 0, %s44
    %s68 = sphi 0, %s70
    %s71 = sphi 0, %s68
    %s72 = sphi 0, %s71
    %s88 = sphi 0, %s72
    %s96 = sphi 0, %s98
    %s99 = sphi 0, %s96
    %s100 = sphi 0, %s99
    %s116 = sphi 0, %s100
    %s124 = sphi 0, %s126
    %s127 = sphi 0, %s124
    %s128 = sphi 0, %s127
    %s144 = sphi 0, %s128
  $region4: #{multi_head_attention.4} parent=0 // loop_header_branch
    %12 = sbr.rel (%p10) target = $region8
  $region5: #{multi_head_attention.4} parent=0 // loop_body
    %s14 = ssub.s32 %s9, 1
    %s15 = ssub.s32 %s9, 2
    %s25 = sadd.s32 1, %s18
    %p26 = scmp.ge.s32.totalorder %s25, 1
    %s27 = scalar_select %p26, 0, %s25
    %s28 = sadd.s32 1, %s17
    %s29 = scalar_select %p26, %s28, %s17
    %p30 = scmp.ge.s32.totalorder %s29, 1
    %s31 = scalar_select %p30, 0, %s29
    %s32 = sadd.s32 1, %s16
    %s33 = scalar_select %p30, %s32, %s16
    %p34 = scmp.ge.s32.totalorder %s33, 2
    %s35 = scalar_select %p34, 0, %s33
    %s36 = sadd.s32 %s16, %s17
    %s37 = sadd.s32 %s35, %s31
    %s38 = ssub.s32 %s36, %s37
    %p39 = scmp.eq.s32.totalorder %s38, 0
    %s41 = sadd.s32 %s40, 1
    %s42 = scalar_select %p39, %s40, %s41
    %p45 = pneg %p39
    %p46 = scmp.eq.s32.totalorder %s9, 1
    %p47 = por %p45, %p46
    %p48 = scmp.ne.s32.totalorder %s40, %s43
    %p49 = scmp.eq.s32.totalorder %s9, 0
    %p50 = por %p48, %p49
    %p51 = scmp.ne.s32.totalorder %s40, %s43
    %p52 = scmp.eq.s32.totalorder %s14, 1
    %p53 = por %p51, %p52
    %p54 = scmp.ne.s32.totalorder %s43, %s44
    %p55 = scmp.eq.s32.totalorder %s14, 0
    %p56 = por %p54, %p55
    %p57 = scmp.ne.s32.totalorder %s43, %s44
    %p58 = scmp.eq.s32.totalorder %s15, 1
    %p59 = por %p57, %p58
    %p61 = scmp.ne.s32.totalorder %s44, %s60
    %p62 = scmp.eq.s32.totalorder %s15, 0
    %p63 = por %p61, %p62
    %s64 = sadd.s32 %s16, %s18
    %s65 = sadd.s32 %s35, %s27
    %s66 = ssub.s32 %s64, %s65
    %p67 = scmp.eq.s32.totalorder %s66, 0
    %s69 = sadd.s32 %s68, 1
    %s70 = scalar_select %p67, %s68, %s69
    %p73 = pneg %p67
    %p74 = scmp.eq.s32.totalorder %s9, 1
    %p75 = por %p73, %p74
    %p76 = scmp.ne.s32.totalorder %s68, %s71
    %p77 = scmp.eq.s32.totalorder %s9, 0
    %p78 = por %p76, %p77
    %p79 = scmp.ne.s32.totalorder %s68, %s71
    %p80 = scmp.eq.s32.totalorder %s14, 1
    %p81 = por %p79, %p80
    %p82 = scmp.ne.s32.totalorder %s71, %s72
    %p83 = scmp.eq.s32.totalorder %s14, 0
    %p84 = por %p82, %p83
    %p85 = scmp.ne.s32.totalorder %s71, %s72
    %p86 = scmp.eq.s32.totalorder %s15, 1
    %p87 = por %p85, %p86
    %p89 = scmp.ne.s32.totalorder %s72, %s88
    %p90 = scmp.eq.s32.totalorder %s15, 0
    %p91 = por %p89, %p90
    %s92 = sadd.s32 %s16, %s18
    %s93 = sadd.s32 %s35, %s27
    %s94 = ssub.s32 %s92, %s93
    %p95 = scmp.eq.s32.totalorder %s94, 0
    %s97 = sadd.s32 %s96, 1
    %s98 = scalar_select %p95, %s96, %s97
    %p101 = pneg %p95
    %p102 = scmp.eq.s32.totalorder %s9, 1
    %p103 = por %p101, %p102
    %p104 = scmp.ne.s32.totalorder %s96, %s99
    %p105 = scmp.eq.s32.totalorder %s9, 0
    %p106 = por %p104, %p105
    %p107 = scmp.ne.s32.totalorder %s96, %s99
    %p108 = scmp.eq.s32.totalorder %s14, 1
    %p109 = por %p107, %p108
    %p110 = scmp.ne.s32.totalorder %s99, %s100
    %p111 = scmp.eq.s32.totalorder %s14, 0
    %p112 = por %p110, %p111
    %p113 = scmp.ne.s32.totalorder %s99, %s100
    %p114 = scmp.eq.s32.totalorder %s15, 1
    %p115 = por %p113, %p114
    %p117 = scmp.ne.s32.totalorder %s100, %s116
    %p118 = scmp.eq.s32.totalorder %s15, 0
    %p119 = por %p117, %p118
    %s120 = sadd.s32 %s16, %s17
    %s121 = sadd.s32 %s35, %s31
    %s122 = ssub.s32 %s120, %s121
    %p123 = scmp.eq.s32.totalorder %s122, 0
    %s125 = sadd.s32 %s124, 1
    %s126 = scalar_select %p123, %s124, %s125
    %p129 = pneg %p123
    %p130 = scmp.eq.s32.totalorder %s9, 1
    %p131 = por %p129, %p130
    %p132 = scmp.ne.s32.totalorder %s124, %s127
    %p133 = scmp.eq.s32.totalorder %s9, 0
    %p134 = por %p132, %p133
    %p135 = scmp.ne.s32.totalorder %s124, %s127
    %p136 = scmp.eq.s32.totalorder %s14, 1
    %p137 = por %p135, %p136
    %p138 = scmp.ne.s32.totalorder %s127, %s128
    %p139 = scmp.eq.s32.totalorder %s14, 0
    %p140 = por %p138, %p139
    %p141 = scmp.ne.s32.totalorder %s127, %s128
    %p142 = scmp.eq.s32.totalorder %s15, 1
    %p143 = por %p141, %p142
    %p145 = scmp.ne.s32.totalorder %s128, %s144
    %p146 = scmp.eq.s32.totalorder %s15, 0
    %p147 = por %p145, %p146
    %p148 = scmp.le.s32.totalorder 1, %s9
    %p149 = scmp.lt.s32.totalorder %s9, 3
    %p150 = pnand %p148, %p149
    %p151 = pneg %p150
    // Predicated region
    $region9: #{multi_head_attention.4} parent=5 // pred_check
      _
    $region10: #{multi_head_attention.4} parent=5 // pred_check_branch
      %153 = sbr.rel (%p150) target = $region12
    $region11: #{multi_head_attention.4} parent=5 // pred_region
      %s154 = ssub.s32 %s9, 1
    $region12: #{multi_head_attention.4} parent=5 // pred_fallthru
      _
    %p155 = scmp.lt.s32.totalorder %s9, 2
    // Predicated region
    $region13: #{multi_head_attention.4} parent=5 // pred_check
      %p156 = pneg %p155
    $region14: #{multi_head_attention.4} parent=5 // pred_check_branch
      %158 = sbr.rel (%p156) target = $region16
    $region15: #{multi_head_attention.4} parent=5 // pred_region
      // Predicated region
      $region17: #{multi_head_attention.4} parent=15 // pred_check
        %p159 = pneg %p50
      $region18: #{multi_head_attention.4} parent=15 // pred_check_branch
        %161 = sbr.rel (%p159) target = $region20
      $region19: #{multi_head_attention.4} parent=15 // pred_region
        %s162 = sadd.s32 %s16, %s17
        %p163 = scmp.lt.s32.totalorder %s162, 1
        %s164 = scalar_select %p163, %s162, 1
        %s165 = smul.addr %s164, 8
        %s166 = scalar_lea.vmem %s0, %s165
        %s167 = sadd.s32 %s16, %s17
      $region20: #{multi_head_attention.4} parent=15 // pred_fallthru
        _
      // Predicated region
      $region21: #{multi_head_attention.4} parent=15 // pred_check
        %p168 = pneg %p78
      $region22: #{multi_head_attention.4} parent=15 // pred_check_branch
        %170 = sbr.rel (%p168) target = $region24
      $region23: #{multi_head_attention.4} parent=15 // pred_region
        %s171 = sadd.s32 %s16, %s18
        %p172 = scmp.lt.s32.totalorder %s171, 1
        %s173 = scalar_select %p172, %s171, 1
        %s174 = sadd.s32 %s173, 2
        %s175 = smul.addr %s174, 8
        %s176 = scalar_lea.vmem %s1, %s175
        %s177 = sadd.s32 %s16, %s18
      $region24: #{multi_head_attention.4} parent=15 // pred_fallthru
        _
      // Predicated region
      $region25: #{multi_head_attention.4} parent=15 // pred_check
        %p178 = pneg %p106
      $region26: #{multi_head_attention.4} parent=15 // pred_check_branch
        %180 = sbr.rel (%p178) target = $region28
      $region27: #{multi_head_attention.4} parent=15 // pred_region
        %s181 = sadd.s32 %s16, %s18
        %p182 = scmp.lt.s32.totalorder %s181, 1
        %s183 = scalar_select %p182, %s181, 1
        %s184 = sadd.s32 %s183, 4
        %s185 = smul.addr %s184, 8
        %s186 = scalar_lea.vmem %s2, %s185
        %s187 = sadd.s32 %s16, %s18
      $region28: #{multi_head_attention.4} parent=15 // pred_fallthru
        _
    $region16: #{multi_head_attention.4} parent=5 // pred_fallthru
      _
    %p188 = scmp.le.s32.totalorder 1, %s9
    %p189 = scmp.lt.s32.totalorder %s9, 3
    %p190 = pnand %p188, %p189
    %p191 = pneg %p190
    // Predicated region
    $region29: #{multi_head_attention.4} parent=5 // pred_check
      _
    $region30: #{multi_head_attention.4} parent=5 // pred_check_branch
      %193 = sbr.rel (%p190) target = $region32
    $region31: #{multi_head_attention.4} parent=5 // pred_region
      %s194 = ssub.s32 %s9, 1
      %s195 = sadd.s32 %s19, %s20
      %p196 = scmp.lt.s32.totalorder %s195, 1
      %s197 = scalar_select %p196, %s195, 1
      %s198 = smul.addr %s197, 8
      %s199 = scalar_lea.vmem %s0, %s198
      %p200 = pneg %p56
      %p201 = pneg %p53
      %s202 = sadd.s32 %s19, %s21
      %p203 = scmp.lt.s32.totalorder %s202, 1
      %s204 = scalar_select %p203, %s202, 1
      %s205 = sadd.s32 %s204, 2
      %s206 = smul.addr %s205, 8
      %s207 = scalar_lea.vmem %s1, %s206
      %p208 = pneg %p84
      %p209 = pneg %p81
      %s210 = sadd.s32 %s19, %s21
      %p211 = scmp.lt.s32.totalorder %s210, 1
      %s212 = scalar_select %p211, %s210, 1
      %s213 = sadd.s32 %s212, 4
      %s214 = smul.addr %s213, 8
      %s215 = scalar_lea.vmem %s2, %s214
      %p216 = pneg %p112
      %p217 = pneg %p109
      %p218 = pneg %p140
      %p219 = pneg %p137
      %s220 = sadd.s32 %s19, %s20
      %p221 = scmp.lt.s32.totalorder %s220, 1
      %s222 = scalar_select %p221, %s220, 1
      %s223 = smul.addr %s222, 8
      %s224 = scalar_lea.vmem %s3, %s223
      %s225 = sadd.s32 %s19, %s20
      %p226 = scmp.lt.s32.totalorder %s225, 1
      %s227 = scalar_select %p226, %s225, 1
      %s228 = smul.addr %s227, 8
      %s229 = scalar_lea.vmem %s0, %s228
      %s230 = sadd.s32 %s19, %s20
      %s231 = sadd.s32 %s19, %s21
      %p232 = scmp.lt.s32.totalorder %s231, 1
      %s233 = scalar_select %p232, %s231, 1
      %s234 = sadd.s32 %s233, 2
      %s235 = smul.addr %s234, 8
      %s236 = scalar_lea.vmem %s1, %s235
      %s237 = sadd.s32 %s19, %s21
      %s238 = sadd.s32 %s19, %s21
      %p239 = scmp.lt.s32.totalorder %s238, 1
      %s240 = scalar_select %p239, %s238, 1
      %s241 = sadd.s32 %s240, 4
      %s242 = smul.addr %s241, 8
      %s243 = scalar_lea.vmem %s2, %s242
      %s244 = sadd.s32 %s19, %s21
      %s245 = sadd.s32 %s19, %s20
      %p246 = scmp.lt.s32.totalorder %s245, 1
      %s247 = scalar_select %p246, %s245, 1
      %s248 = smul.addr %s247, 8
      %s249 = scalar_lea.vmem %s3, %s248
      %s250 = sadd.s32 %s19, %s20
      %p251 = scmp.eq.s32.totalorder %s21, 0
      // Predicated region
      $region33: #{multi_head_attention.4} parent=31 // pred_check
        %p252 = pneg %p251
      $region34: #{multi_head_attention.4} parent=31 // pred_check_branch
        %254 = sbr.rel (%p252) target = $region36
      $region35: #{multi_head_attention.4} parent=31 // pred_region
        %vm255 = vcmask 7168
        %256 = vst.msk [vmem:[#allocation2] sm:$0xff] %vm255, -inf
        %257 = vst.msk [vmem:[#allocation2 + $0x8] sm:$0xff] %vm255, -inf
        %258 = vst.msk [vmem:[#allocation2 + $0x10] sm:$0xff] %vm255, -inf
        %259 = vst.msk [vmem:[#allocation2 + $0x18] sm:$0xff] %vm255, -inf
        %260 = vst.msk [vmem:[#allocation3] sm:$0xff] %vm255, 0.0
        %261 = vst.msk [vmem:[#allocation3 + $0x8] sm:$0xff] %vm255, 0.0
        %262 = vst.msk [vmem:[#allocation3 + $0x10] sm:$0xff] %vm255, 0.0
        %263 = vst.msk [vmem:[#allocation3 + $0x18] sm:$0xff] %vm255, 0.0
        %vm264 = vcmask 261120
        %265 = vst.msk [vmem:[#allocation4] sm:$0xff] %vm264, 0.0
      $region36: #{multi_head_attention.4} parent=31 // pred_fallthru
        _
      %v266 = vld [vmem:[%s229] sm:$0xff]
      %v267 = vld [vmem:[%s236] sm:$0xff]
      %v268 = vld [vmem:[%s243] sm:$0xff]
      %vm269 = vcmask 64512
      %v271 = vsel %vm269, %v266, 0
      %v274 = vsel %vm269, %v267, 0
      %276 = vmatprep.subr.mxu0 0.0
      %277 = vmatpush1.xpose.msra.mxu0 0.0
      %278 = vmatprep.subr.mxu0 0.0
      %279 = vmatpush1.xpose.msra.mxu0 0.0
      %280 = vmatprep.subr.mxu0 0.0
      %281 = vmatpush1.xpose.msra.mxu0 0.0
      %282 = vmatprep.subr.mxu0 0.0
      %283 = vmatpush1.xpose.msra.mxu0 0.0
      %284 = vmatprep.subr.mxu0 0.0
      %285 = vmatpush1.xpose.msra.mxu0 0.0
      %286 = vmatprep.subr.mxu0 0.0
      %287 = vmatpush1.xpose.msra.mxu0 0.0
      %288 = vmatprep.subr.mxu0 0.0
      %289 = vmatpush1.xpose.msra.mxu0 0.0
      %290 = vmatprep.subr.mxu0 0.0
      %291 = vmatpush1.xpose.msra.mxu0 0.0
      %292 = vmatprep.subr.mxu0 0.0
      %293 = vmatpush1.xpose.msra.mxu0 0.0
      %294 = vmatprep.subr.mxu0 0.0
      %295 = vmatpush1.xpose.msra.mxu0 0.0
      %296 = vmatprep.subr.mxu0 0.0
      %297 = vmatpush1.xpose.msra.mxu0 0.0
      %298 = vmatprep.subr.mxu0 0.0
      %299 = vmatpush1.xpose.msra.mxu0 0.0
      %300 = vmatprep.subr.mxu0 0.0
      %301 = vmatpush1.xpose.msra.mxu0 0.0
      %302 = vmatprep.subr.mxu0 0.0
      %303 = vmatpush1.xpose.msra.mxu0 0.0
      %304 = vmatprep.subr.mxu0 0.0
      %305 = vmatpush1.xpose.msra.mxu0 0.0
      %306 = vmatprep.subr.mxu0 0.0
      %307 = vmatpush1.xpose.msra.mxu0 %v274
      %308 = vmatprep.subr.mxu0 0.0
      %309 = vmatpush2.xpose.msra.mxu0 0.0
      %310 = vmatprep.subr.mxu0 0.0
      %311 = vmatpush2.xpose.msra.mxu0 0.0
      %312 = vmatprep.subr.mxu0 0.0
      %313 = vmatpush2.xpose.msra.mxu0 0.0
      %314 = vmatprep.subr.mxu0 0.0
      %315 = vmatpush2.xpose.msra.mxu0 0.0
      %316 = vmatprep.subr.mxu0 0.0
      %317 = vmatpush2.xpose.msra.mxu0 0.0
      %318 = vmatprep.subr.mxu0 0.0
      %319 = vmatpush2.xpose.msra.mxu0 0.0
      %320 = vmatprep.subr.mxu0 0.0
      %321 = vmatpush2.xpose.msra.mxu0 0.0
      %322 = vmatprep.subr.mxu0 0.0
      %323 = vmatpush2.xpose.msra.mxu0 0.0
      %324 = vmatprep.subr.mxu0 0.0
      %325 = vmatpush2.xpose.msra.mxu0 0.0
      %326 = vmatprep.subr.mxu0 0.0
      %327 = vmatpush2.xpose.msra.mxu0 0.0
      %328 = vmatprep.subr.mxu0 0.0
      %329 = vmatpush2.xpose.msra.mxu0 0.0
      %330 = vmatprep.subr.mxu0 0.0
      %331 = vmatpush2.xpose.msra.mxu0 0.0
      %332 = vmatprep.subr.mxu0 0.0
      %333 = vmatpush2.xpose.msra.mxu0 0.0
      %334 = vmatprep.subr.mxu0 0.0
      %335 = vmatpush2.xpose.msra.mxu0 0.0
      %336 = vmatprep.subr.mxu0 0.0
      %337 = vmatpush2.xpose.msra.mxu0 0.0
      %338 = vmatprep.subr.mxu0 0.0
      %339 = vmatpush2.xpose.msra.mxu0 0.0
      %340 = vmatprep.mubr.f32.mxu0 0.0
      %341 = vmatmul.mubr.f32.gmra.mxu0 %v271
      %v342 = vpop.f32.mrf.mxu0
      %v343 = vadd.f32 0.0, %v342
      %v344 = vpop.f32.mrf.mxu0
      %345 = vdwg.mxu0
      %v346 = vld [vmem:[#allocation2] sm:$0xff]
      %v347 = vsel %vm269, %v343, -inf
      %348 = vmax.xlane.f32.xlu0 %v347
      %v349 = vpop.xlane.xlu0 %348
      %v350 = vmax.f32 %v346, %v349
      %v351 = vsub.f32 %v346, %v350
      %v352 = vmul.f32 %v351, 1.442695
      %v353 = vpow.pop %v352
      %355 = vset.pattern.permute.xlu0 0
      %356 = vperm.xlu0 %355, %v350
      %v357 = vpop.permute.xlu0 %356
      %v359 = vsub.f32 %v343, %v357
      %v360 = vmul.f32 %v359, 1.442695
      %v361 = vpow.pop %v360
      %v362 = vld [vmem:[#allocation3] sm:$0xff]
      %v363 = vmul.f32 %v353, %v362
      %v364 = vsel %vm269, %v361, 0.0
      %365 = vadd.xlane.f32.xlu0 %v364
      %v366 = vpop.xlane.xlu0 %365
      %v367 = vadd.f32 %v363, %v366
      %vm368 = vcmask 7168
      %369 = vst.msk [vmem:[#allocation3] sm:$0xff] %vm368, %v367
      %v371 = vsel %vm269, %v361, 0
      %373 = vmatprep.subr.mxu0 0.0
      %374 = vmatpush1.msra.mxu0 0.0
      %375 = vmatprep.subr.mxu0 0.0
      %376 = vmatpush1.msra.mxu0 0.0
      %377 = vmatprep.subr.mxu0 0.0
      %378 = vmatpush1.msra.mxu0 0.0
      %379 = vmatprep.subr.mxu0 0.0
      %380 = vmatpush1.msra.mxu0 0.0
      %381 = vmatprep.subr.mxu0 0.0
      %382 = vmatpush1.msra.mxu0 0.0
      %383 = vmatprep.subr.mxu0 0.0
      %384 = vmatpush1.msra.mxu0 0.0
      %385 = vmatprep.subr.mxu0 0.0
      %386 = vmatpush1.msra.mxu0 0.0
      %387 = vmatprep.subr.mxu0 0.0
      %388 = vmatpush1.msra.mxu0 0.0
      %389 = vmatprep.subr.mxu0 0.0
      %390 = vmatpush1.msra.mxu0 0.0
      %391 = vmatprep.subr.mxu0 0.0
      %392 = vmatpush1.msra.mxu0 0.0
      %393 = vmatprep.subr.mxu0 0.0
      %394 = vmatpush1.msra.mxu0 0.0
      %395 = vmatprep.subr.mxu0 0.0
      %396 = vmatpush1.msra.mxu0 0.0
      %397 = vmatprep.subr.mxu0 0.0
      %398 = vmatpush1.msra.mxu0 0.0
      %399 = vmatprep.subr.mxu0 0.0
      %400 = vmatpush1.msra.mxu0 0.0
      %401 = vmatprep.subr.mxu0 0.0
      %402 = vmatpush1.msra.mxu0 0.0
      %403 = vmatprep.subr.mxu0 0.0
      %404 = vmatpush1.msra.mxu0 %v268
      %405 = vmatprep.subr.mxu0 0.0
      %406 = vmatpush2.msra.mxu0 0.0
      %407 = vmatprep.subr.mxu0 0.0
      %408 = vmatpush2.msra.mxu0 0.0
      %409 = vmatprep.subr.mxu0 0.0
      %410 = vmatpush2.msra.mxu0 0.0
      %411 = vmatprep.subr.mxu0 0.0
      %412 = vmatpush2.msra.mxu0 0.0
      %413 = vmatprep.subr.mxu0 0.0
      %414 = vmatpush2.msra.mxu0 0.0
      %415 = vmatprep.subr.mxu0 0.0
      %416 = vmatpush2.msra.mxu0 0.0
      %417 = vmatprep.subr.mxu0 0.0
      %418 = vmatpush2.msra.mxu0 0.0
      %419 = vmatprep.subr.mxu0 0.0
      %420 = vmatpush2.msra.mxu0 0.0
      %421 = vmatprep.subr.mxu0 0.0
      %422 = vmatpush2.msra.mxu0 0.0
      %423 = vmatprep.subr.mxu0 0.0
      %424 = vmatpush2.msra.mxu0 0.0
      %425 = vmatprep.subr.mxu0 0.0
      %426 = vmatpush2.msra.mxu0 0.0
      %427 = vmatprep.subr.mxu0 0.0
      %428 = vmatpush2.msra.mxu0 0.0
      %429 = vmatprep.subr.mxu0 0.0
      %430 = vmatpush2.msra.mxu0 0.0
      %431 = vmatprep.subr.mxu0 0.0
      %432 = vmatpush2.msra.mxu0 0.0
      %433 = vmatprep.subr.mxu0 0.0
      %434 = vmatpush2.msra.mxu0 0.0
      %435 = vmatprep.subr.mxu0 0.0
      %436 = vmatpush2.msra.mxu0 0.0
      %437 = vmatprep.mubr.f32.mxu0 0.0
      %438 = vmatmul.mubr.f32.gmra.mxu0 %v371
      %v439 = vpop.f32.mrf.mxu0
      %v440 = vadd.f32 0.0, %v439
      %v441 = vpop.f32.mrf.mxu0
      %442 = vdwg.mxu0
      %v443 = vld [vmem:[#allocation4] sm:$0xff]
      %445 = vset.pattern.permute.xlu0 0
      %446 = vperm.xlu0 %445, %v353
      %v447 = vpop.permute.xlu0 %446
      %v449 = vmul.f32 %v447, %v443
      %v450 = vadd.f32 %v449, %v440
      %451 = vst.msk [vmem:[#allocation4] sm:$0xff] %vm269, %v450
      %452 = vst.msk [vmem:[#allocation2] sm:$0xff] %vm368, %v350
      %v453 = vld [vmem:[%s229] sm:$0xff]
      %v454 = vld [vmem:[%s236] sm:$0xff]
      %v455 = vld [vmem:[%s243] sm:$0xff]
      %457 = vrot.lane.b32.xlu0 %v453, 120
      %v458 = vpop.permute.xlu0 %457
      %460 = vrot.lane.b32.xlu0 %v454, 120
      %v461 = vpop.permute.xlu0 %460
      %v462 = vsel %vm269, %v458, 0
      %v464 = vsel %vm269, %v461, 0
      %466 = vmatprep.subr.mxu0 0.0
      %467 = vmatpush1.xpose.msra.mxu0 0.0
      %468 = vmatprep.subr.mxu0 0.0
      %469 = vmatpush1.xpose.msra.mxu0 0.0
      %470 = vmatprep.subr.mxu0 0.0
      %471 = vmatpush1.xpose.msra.mxu0 0.0
      %472 = vmatprep.subr.mxu0 0.0
      %473 = vmatpush1.xpose.msra.mxu0 0.0
      %474 = vmatprep.subr.mxu0 0.0
      %475 = vmatpush1.xpose.msra.mxu0 0.0
      %476 = vmatprep.subr.mxu0 0.0
      %477 = vmatpush1.xpose.msra.mxu0 0.0
      %478 = vmatprep.subr.mxu0 0.0
      %479 = vmatpush1.xpose.msra.mxu0 0.0
      %480 = vmatprep.subr.mxu0 0.0
      %481 = vmatpush1.xpose.msra.mxu0 0.0
      %482 = vmatprep.subr.mxu0 0.0
      %483 = vmatpush1.xpose.msra.mxu0 0.0
      %484 = vmatprep.subr.mxu0 0.0
      %485 = vmatpush1.xpose.msra.mxu0 0.0
      %486 = vmatprep.subr.mxu0 0.0
      %487 = vmatpush1.xpose.msra.mxu0 0.0
      %488 = vmatprep.subr.mxu0 0.0
      %489 = vmatpush1.xpose.msra.mxu0 0.0
      %490 = vmatprep.subr.mxu0 0.0
      %491 = vmatpush1.xpose.msra.mxu0 0.0
      %492 = vmatprep.subr.mxu0 0.0
      %493 = vmatpush1.xpose.msra.mxu0 0.0
      %494 = vmatprep.subr.mxu0 0.0
      %495 = vmatpush1.xpose.msra.mxu0 0.0
      %496 = vmatprep.subr.mxu0 0.0
      %497 = vmatpush1.xpose.msra.mxu0 %v464
      %498 = vmatprep.subr.mxu0 0.0
      %499 = vmatpush2.xpose.msra.mxu0 0.0
      %500 = vmatprep.subr.mxu0 0.0
      %501 = vmatpush2.xpose.msra.mxu0 0.0
      %502 = vmatprep.subr.mxu0 0.0
      %503 = vmatpush2.xpose.msra.mxu0 0.0
      %504 = vmatprep.subr.mxu0 0.0
      %505 = vmatpush2.xpose.msra.mxu0 0.0
      %506 = vmatprep.subr.mxu0 0.0
      %507 = vmatpush2.xpose.msra.mxu0 0.0
      %508 = vmatprep.subr.mxu0 0.0
      %509 = vmatpush2.xpose.msra.mxu0 0.0
      %510 = vmatprep.subr.mxu0 0.0
      %511 = vmatpush2.xpose.msra.mxu0 0.0
      %512 = vmatprep.subr.mxu0 0.0
      %513 = vmatpush2.xpose.msra.mxu0 0.0
      %514 = vmatprep.subr.mxu0 0.0
      %515 = vmatpush2.xpose.msra.mxu0 0.0
      %516 = vmatprep.subr.mxu0 0.0
      %517 = vmatpush2.xpose.msra.mxu0 0.0
      %518 = vmatprep.subr.mxu0 0.0
      %519 = vmatpush2.xpose.msra.mxu0 0.0
      %520 = vmatprep.subr.mxu0 0.0
      %521 = vmatpush2.xpose.msra.mxu0 0.0
      %522 = vmatprep.subr.mxu0 0.0
      %523 = vmatpush2.xpose.msra.mxu0 0.0
      %524 = vmatprep.subr.mxu0 0.0
      %525 = vmatpush2.xpose.msra.mxu0 0.0
      %526 = vmatprep.subr.mxu0 0.0
      %527 = vmatpush2.xpose.msra.mxu0 0.0
      %528 = vmatprep.subr.mxu0 0.0
      %529 = vmatpush2.xpose.msra.mxu0 0.0
      %530 = vmatprep.mubr.f32.mxu0 0.0
      %531 = vmatmul.mubr.f32.gmra.mxu0 %v462
      %v532 = vpop.f32.mrf.mxu0
      %v533 = vadd.f32 0.0, %v532
      %v534 = vpop.f32.mrf.mxu0
      %535 = vdwg.mxu0
      %s536 = scalar_lea.vmem [#allocation2], 8
      %v537 = vld [vmem:[%s536] sm:$0xff]
      %v538 = vsel %vm269, %v533, -inf
      %539 = vmax.xlane.f32.xlu0 %v538
      %v540 = vpop.xlane.xlu0 %539
      %v541 = vmax.f32 %v537, %v540
      %v542 = vsub.f32 %v537, %v541
      %v543 = vmul.f32 %v542, 1.442695
      %v544 = vpow.pop %v543
      %546 = vset.pattern.permute.xlu0 0
      %547 = vperm.xlu0 %546, %v541
      %v548 = vpop.permute.xlu0 %547
      %v550 = vsub.f32 %v533, %v548
      %v551 = vmul.f32 %v550, 1.442695
      %v552 = vpow.pop %v551
      %s553 = scalar_lea.vmem [#allocation3], 8
      %v554 = vld [vmem:[%s553] sm:$0xff]
      %v555 = vmul.f32 %v544, %v554
      %v556 = vsel %vm269, %v552, 0.0
      %557 = vadd.xlane.f32.xlu0 %v556
      %v558 = vpop.xlane.xlu0 %557
      %v559 = vadd.f32 %v555, %v558
      %560 = vst.msk [vmem:[%s553] sm:$0xff] %vm368, %v559
      %562 = vrot.lane.b32.xlu0 %v455, 120
      %v563 = vpop.permute.xlu0 %562
      %v566 = vsel %vm269, %v552, 0
      %568 = vmatprep.subr.mxu0 0.0
      %569 = vmatpush1.msra.mxu0 0.0
      %570 = vmatprep.subr.mxu0 0.0
      %571 = vmatpush1.msra.mxu0 0.0
      %572 = vmatprep.subr.mxu0 0.0
      %573 = vmatpush1.msra.mxu0 0.0
      %574 = vmatprep.subr.mxu0 0.0
      %575 = vmatpush1.msra.mxu0 0.0
      %576 = vmatprep.subr.mxu0 0.0
      %577 = vmatpush1.msra.mxu0 0.0
      %578 = vmatprep.subr.mxu0 0.0
      %579 = vmatpush1.msra.mxu0 0.0
      %580 = vmatprep.subr.mxu0 0.0
      %581 = vmatpush1.msra.mxu0 0.0
      %582 = vmatprep.subr.mxu0 0.0
      %583 = vmatpush1.msra.mxu0 0.0
      %584 = vmatprep.subr.mxu0 0.0
      %585 = vmatpush1.msra.mxu0 0.0
      %586 = vmatprep.subr.mxu0 0.0
      %587 = vmatpush1.msra.mxu0 0.0
      %588 = vmatprep.subr.mxu0 0.0
      %589 = vmatpush1.msra.mxu0 0.0
      %590 = vmatprep.subr.mxu0 0.0
      %591 = vmatpush1.msra.mxu0 0.0
      %592 = vmatprep.subr.mxu0 0.0
      %593 = vmatpush1.msra.mxu0 0.0
      %594 = vmatprep.subr.mxu0 0.0
      %595 = vmatpush1.msra.mxu0 0.0
      %596 = vmatprep.subr.mxu0 0.0
      %597 = vmatpush1.msra.mxu0 0.0
      %598 = vmatprep.subr.mxu0 0.0
      %599 = vmatpush1.msra.mxu0 %v563
      %600 = vmatprep.subr.mxu0 0.0
      %601 = vmatpush2.msra.mxu0 0.0
      %602 = vmatprep.subr.mxu0 0.0
      %603 = vmatpush2.msra.mxu0 0.0
      %604 = vmatprep.subr.mxu0 0.0
      %605 = vmatpush2.msra.mxu0 0.0
      %606 = vmatprep.subr.mxu0 0.0
      %607 = vmatpush2.msra.mxu0 0.0
      %608 = vmatprep.subr.mxu0 0.0
      %609 = vmatpush2.msra.mxu0 0.0
      %610 = vmatprep.subr.mxu0 0.0
      %611 = vmatpush2.msra.mxu0 0.0
      %612 = vmatprep.subr.mxu0 0.0
      %613 = vmatpush2.msra.mxu0 0.0
      %614 = vmatprep.subr.mxu0 0.0
      %615 = vmatpush2.msra.mxu0 0.0
      %616 = vmatprep.subr.mxu0 0.0
      %617 = vmatpush2.msra.mxu0 0.0
      %618 = vmatprep.subr.mxu0 0.0
      %619 = vmatpush2.msra.mxu0 0.0
      %620 = vmatprep.subr.mxu0 0.0
      %621 = vmatpush2.msra.mxu0 0.0
      %622 = vmatprep.subr.mxu0 0.0
      %623 = vmatpush2.msra.mxu0 0.0
      %624 = vmatprep.subr.mxu0 0.0
      %625 = vmatpush2.msra.mxu0 0.0
      %626 = vmatprep.subr.mxu0 0.0
      %627 = vmatpush2.msra.mxu0 0.0
      %628 = vmatprep.subr.mxu0 0.0
      %629 = vmatpush2.msra.mxu0 0.0
      %630 = vmatprep.subr.mxu0 0.0
      %631 = vmatpush2.msra.mxu0 0.0
      %632 = vmatprep.mubr.f32.mxu0 0.0
      %633 = vmatmul.mubr.f32.gmra.mxu0 %v566
      %v634 = vpop.f32.mrf.mxu0
      %v635 = vadd.f32 0.0, %v634
      %v636 = vpop.f32.mrf.mxu0
      %637 = vdwg.mxu0
      %v638 = vld [vmem:[#allocation4] sm:$0xff]
      %640 = vset.pattern.permute.xlu0 0
      %641 = vperm.xlu0 %640, %v544
      %v642 = vpop.permute.xlu0 %641
      %v644 = vmul.f32 %v642, %v638
      %646 = vrot.lane.b32.xlu0 %v635, 8
      %v647 = vpop.permute.xlu0 %646
      %v649 = vadd.f32 %v644, %v647
      %vm650 = vcmask 130112
      %651 = vst.msk [vmem:[#allocation4] sm:$0xff] %vm650, %v649
      %652 = vst.msk [vmem:[%s536] sm:$0xff] %vm368, %v541
      %v653 = vld [vmem:[%s229] sm:$0xff]
      %v654 = vld [vmem:[%s236] sm:$0xff]
      %v655 = vld [vmem:[%s243] sm:$0xff]
      %657 = vrot.lane.b32.xlu0 %v653, 112
      %v658 = vpop.permute.xlu0 %657
      %660 = vrot.lane.b32.xlu0 %v654, 112
      %v661 = vpop.permute.xlu0 %660
      %v662 = vsel %vm269, %v658, 0
      %v664 = vsel %vm269, %v661, 0
      %666 = vmatprep.subr.mxu0 0.0
      %667 = vmatpush1.xpose.msra.mxu0 0.0
      %668 = vmatprep.subr.mxu0 0.0
      %669 = vmatpush1.xpose.msra.mxu0 0.0
      %670 = vmatprep.subr.mxu0 0.0
      %671 = vmatpush1.xpose.msra.mxu0 0.0
      %672 = vmatprep.subr.mxu0 0.0
      %673 = vmatpush1.xpose.msra.mxu0 0.0
      %674 = vmatprep.subr.mxu0 0.0
      %675 = vmatpush1.xpose.msra.mxu0 0.0
      %676 = vmatprep.subr.mxu0 0.0
      %677 = vmatpush1.xpose.msra.mxu0 0.0
      %678 = vmatprep.subr.mxu0 0.0
      %679 = vmatpush1.xpose.msra.mxu0 0.0
      %680 = vmatprep.subr.mxu0 0.0
      %681 = vmatpush1.xpose.msra.mxu0 0.0
      %682 = vmatprep.subr.mxu0 0.0
      %683 = vmatpush1.xpose.msra.mxu0 0.0
      %684 = vmatprep.subr.mxu0 0.0
      %685 = vmatpush1.xpose.msra.mxu0 0.0
      %686 = vmatprep.subr.mxu0 0.0
      %687 = vmatpush1.xpose.msra.mxu0 0.0
      %688 = vmatprep.subr.mxu0 0.0
      %689 = vmatpush1.xpose.msra.mxu0 0.0
      %690 = vmatprep.subr.mxu0 0.0
      %691 = vmatpush1.xpose.msra.mxu0 0.0
      %692 = vmatprep.subr.mxu0 0.0
      %693 = vmatpush1.xpose.msra.mxu0 0.0
      %694 = vmatprep.subr.mxu0 0.0
      %695 = vmatpush1.xpose.msra.mxu0 0.0
      %696 = vmatprep.subr.mxu0 0.0
      %697 = vmatpush1.xpose.msra.mxu0 %v664
      %698 = vmatprep.subr.mxu0 0.0
      %699 = vmatpush2.xpose.msra.mxu0 0.0
      %700 = vmatprep.subr.mxu0 0.0
      %701 = vmatpush2.xpose.msra.mxu0 0.0
      %702 = vmatprep.subr.mxu0 0.0
      %703 = vmatpush2.xpose.msra.mxu0 0.0
      %704 = vmatprep.subr.mxu0 0.0
      %705 = vmatpush2.xpose.msra.mxu0 0.0
      %706 = vmatprep.subr.mxu0 0.0
      %707 = vmatpush2.xpose.msra.mxu0 0.0
      %708 = vmatprep.subr.mxu0 0.0
      %709 = vmatpush2.xpose.msra.mxu0 0.0
      %710 = vmatprep.subr.mxu0 0.0
      %711 = vmatpush2.xpose.msra.mxu0 0.0
      %712 = vmatprep.subr.mxu0 0.0
      %713 = vmatpush2.xpose.msra.mxu0 0.0
      %714 = vmatprep.subr.mxu0 0.0
      %715 = vmatpush2.xpose.msra.mxu0 0.0
      %716 = vmatprep.subr.mxu0 0.0
      %717 = vmatpush2.xpose.msra.mxu0 0.0
      %718 = vmatprep.subr.mxu0 0.0
      %719 = vmatpush2.xpose.msra.mxu0 0.0
      %720 = vmatprep.subr.mxu0 0.0
      %721 = vmatpush2.xpose.msra.mxu0 0.0
      %722 = vmatprep.subr.mxu0 0.0
      %723 = vmatpush2.xpose.msra.mxu0 0.0
      %724 = vmatprep.subr.mxu0 0.0
      %725 = vmatpush2.xpose.msra.mxu0 0.0
      %726 = vmatprep.subr.mxu0 0.0
      %727 = vmatpush2.xpose.msra.mxu0 0.0
      %728 = vmatprep.subr.mxu0 0.0
      %729 = vmatpush2.xpose.msra.mxu0 0.0
      %730 = vmatprep.mubr.f32.mxu0 0.0
      %731 = vmatmul.mubr.f32.gmra.mxu0 %v662
      %v732 = vpop.f32.mrf.mxu0
      %v733 = vadd.f32 0.0, %v732
      %v734 = vpop.f32.mrf.mxu0
      %735 = vdwg.mxu0
      %s736 = scalar_lea.vmem [#allocation2], 16
      %v737 = vld [vmem:[%s736] sm:$0xff]
      %v738 = vsel %vm269, %v733, -inf
      %739 = vmax.xlane.f32.xlu0 %v738
      %v740 = vpop.xlane.xlu0 %739
      %v741 = vmax.f32 %v737, %v740
      %v742 = vsub.f32 %v737, %v741
      %v743 = vmul.f32 %v742, 1.442695
      %v744 = vpow.pop %v743
      %746 = vset.pattern.permute.xlu0 0
      %747 = vperm.xlu0 %746, %v741
      %v748 = vpop.permute.xlu0 %747
      %v750 = vsub.f32 %v733, %v748
      %v751 = vmul.f32 %v750, 1.442695
      %v752 = vpow.pop %v751
      %s753 = scalar_lea.vmem [#allocation3], 16
      %v754 = vld [vmem:[%s753] sm:$0xff]
      %v755 = vmul.f32 %v744, %v754
      %v756 = vsel %vm269, %v752, 0.0
      %757 = vadd.xlane.f32.xlu0 %v756
      %v758 = vpop.xlane.xlu0 %757
      %v759 = vadd.f32 %v755, %v758
      %760 = vst.msk [vmem:[%s753] sm:$0xff] %vm368, %v759
      %762 = vrot.lane.b32.xlu0 %v655, 112
      %v763 = vpop.permute.xlu0 %762
      %v766 = vsel %vm269, %v752, 0
      %768 = vmatprep.subr.mxu0 0.0
      %769 = vmatpush1.msra.mxu0 0.0
      %770 = vmatprep.subr.mxu0 0.0
      %771 = vmatpush1.msra.mxu0 0.0
      %772 = vmatprep.subr.mxu0 0.0
      %773 = vmatpush1.msra.mxu0 0.0
      %774 = vmatprep.subr.mxu0 0.0
      %775 = vmatpush1.msra.mxu0 0.0
      %776 = vmatprep.subr.mxu0 0.0
      %777 = vmatpush1.msra.mxu0 0.0
      %778 = vmatprep.subr.mxu0 0.0
      %779 = vmatpush1.msra.mxu0 0.0
      %780 = vmatprep.subr.mxu0 0.0
      %781 = vmatpush1.msra.mxu0 0.0
      %782 = vmatprep.subr.mxu0 0.0
      %783 = vmatpush1.msra.mxu0 0.0
      %784 = vmatprep.subr.mxu0 0.0
      %785 = vmatpush1.msra.mxu0 0.0
      %786 = vmatprep.subr.mxu0 0.0
      %787 = vmatpush1.msra.mxu0 0.0
      %788 = vmatprep.subr.mxu0 0.0
      %789 = vmatpush1.msra.mxu0 0.0
      %790 = vmatprep.subr.mxu0 0.0
      %791 = vmatpush1.msra.mxu0 0.0
      %792 = vmatprep.subr.mxu0 0.0
      %793 = vmatpush1.msra.mxu0 0.0
      %794 = vmatprep.subr.mxu0 0.0
      %795 = vmatpush1.msra.mxu0 0.0
      %796 = vmatprep.subr.mxu0 0.0
      %797 = vmatpush1.msra.mxu0 0.0
      %798 = vmatprep.subr.mxu0 0.0
      %799 = vmatpush1.msra.mxu0 %v763
      %800 = vmatprep.subr.mxu0 0.0
      %801 = vmatpush2.msra.mxu0 0.0
      %802 = vmatprep.subr.mxu0 0.0
      %803 = vmatpush2.msra.mxu0 0.0
      %804 = vmatprep.subr.mxu0 0.0
      %805 = vmatpush2.msra.mxu0 0.0
      %806 = vmatprep.subr.mxu0 0.0
      %807 = vmatpush2.msra.mxu0 0.0
      %808 = vmatprep.subr.mxu0 0.0
      %809 = vmatpush2.msra.mxu0 0.0
      %810 = vmatprep.subr.mxu0 0.0
      %811 = vmatpush2.msra.mxu0 0.0
      %812 = vmatprep.subr.mxu0 0.0
      %813 = vmatpush2.msra.mxu0 0.0
      %814 = vmatprep.subr.mxu0 0.0
      %815 = vmatpush2.msra.mxu0 0.0
      %816 = vmatprep.subr.mxu0 0.0
      %817 = vmatpush2.msra.mxu0 0.0
      %818 = vmatprep.subr.mxu0 0.0
      %819 = vmatpush2.msra.mxu0 0.0
      %820 = vmatprep.subr.mxu0 0.0
      %821 = vmatpush2.msra.mxu0 0.0
      %822 = vmatprep.subr.mxu0 0.0
      %823 = vmatpush2.msra.mxu0 0.0
      %824 = vmatprep.subr.mxu0 0.0
      %825 = vmatpush2.msra.mxu0 0.0
      %826 = vmatprep.subr.mxu0 0.0
      %827 = vmatpush2.msra.mxu0 0.0
      %828 = vmatprep.subr.mxu0 0.0
      %829 = vmatpush2.msra.mxu0 0.0
      %830 = vmatprep.subr.mxu0 0.0
      %831 = vmatpush2.msra.mxu0 0.0
      %832 = vmatprep.mubr.f32.mxu0 0.0
      %833 = vmatmul.mubr.f32.gmra.mxu0 %v766
      %v834 = vpop.f32.mrf.mxu0
      %v835 = vadd.f32 0.0, %v834
      %v836 = vpop.f32.mrf.mxu0
      %837 = vdwg.mxu0
      %v838 = vld [vmem:[#allocation4] sm:$0xff]
      %840 = vset.pattern.permute.xlu0 0
      %841 = vperm.xlu0 %840, %v744
      %v842 = vpop.permute.xlu0 %841
      %v844 = vmul.f32 %v842, %v838
      %846 = vrot.lane.b32.xlu0 %v835, 16
      %v847 = vpop.permute.xlu0 %846
      %v849 = vadd.f32 %v844, %v847
      %vm850 = vcmask 195712
      %851 = vst.msk [vmem:[#allocation4] sm:$0xff] %vm850, %v849
      %852 = vst.msk [vmem:[%s736] sm:$0xff] %vm368, %v741
      %v853 = vld [vmem:[%s229] sm:$0xff]
      %v854 = vld [vmem:[%s236] sm:$0xff]
      %v855 = vld [vmem:[%s243] sm:$0xff]
      %857 = vrot.lane.b32.xlu0 %v853, 104
      %v858 = vpop.permute.xlu0 %857
      %860 = vrot.lane.b32.xlu0 %v854, 104
      %v861 = vpop.permute.xlu0 %860
      %v862 = vsel %vm269, %v858, 0
      %v864 = vsel %vm269, %v861, 0
      %866 = vmatprep.subr.mxu0 0.0
      %867 = vmatpush1.xpose.msra.mxu0 0.0
      %868 = vmatprep.subr.mxu0 0.0
      %869 = vmatpush1.xpose.msra.mxu0 0.0
      %870 = vmatprep.subr.mxu0 0.0
      %871 = vmatpush1.xpose.msra.mxu0 0.0
      %872 = vmatprep.subr.mxu0 0.0
      %873 = vmatpush1.xpose.msra.mxu0 0.0
      %874 = vmatprep.subr.mxu0 0.0
      %875 = vmatpush1.xpose.msra.mxu0 0.0
      %876 = vmatprep.subr.mxu0 0.0
      %877 = vmatpush1.xpose.msra.mxu0 0.0
      %878 = vmatprep.subr.mxu0 0.0
      %879 = vmatpush1.xpose.msra.mxu0 0.0
      %880 = vmatprep.subr.mxu0 0.0
      %881 = vmatpush1.xpose.msra.mxu0 0.0
      %882 = vmatprep.subr.mxu0 0.0
      %883 = vmatpush1.xpose.msra.mxu0 0.0
      %884 = vmatprep.subr.mxu0 0.0
      %885 = vmatpush1.xpose.msra.mxu0 0.0
      %886 = vmatprep.subr.mxu0 0.0
      %887 = vmatpush1.xpose.msra.mxu0 0.0
      %888 = vmatprep.subr.mxu0 0.0
      %889 = vmatpush1.xpose.msra.mxu0 0.0
      %890 = vmatprep.subr.mxu0 0.0
      %891 = vmatpush1.xpose.msra.mxu0 0.0
      %892 = vmatprep.subr.mxu0 0.0
      %893 = vmatpush1.xpose.msra.mxu0 0.0
      %894 = vmatprep.subr.mxu0 0.0
      %895 = vmatpush1.xpose.msra.mxu0 0.0
      %896 = vmatprep.subr.mxu0 0.0
      %897 = vmatpush1.xpose.msra.mxu0 %v864
      %898 = vmatprep.subr.mxu0 0.0
      %899 = vmatpush2.xpose.msra.mxu0 0.0
      %900 = vmatprep.subr.mxu0 0.0
      %901 = vmatpush2.xpose.msra.mxu0 0.0
      %902 = vmatprep.subr.mxu0 0.0
      %903 = vmatpush2.xpose.msra.mxu0 0.0
      %904 = vmatprep.subr.mxu0 0.0
      %905 = vmatpush2.xpose.msra.mxu0 0.0
      %906 = vmatprep.subr.mxu0 0.0
      %907 = vmatpush2.xpose.msra.mxu0 0.0
      %908 = vmatprep.subr.mxu0 0.0
      %909 = vmatpush2.xpose.msra.mxu0 0.0
      %910 = vmatprep.subr.mxu0 0.0
      %911 = vmatpush2.xpose.msra.mxu0 0.0
      %912 = vmatprep.subr.mxu0 0.0
      %913 = vmatpush2.xpose.msra.mxu0 0.0
      %914 = vmatprep.subr.mxu0 0.0
      %915 = vmatpush2.xpose.msra.mxu0 0.0
      %916 = vmatprep.subr.mxu0 0.0
      %917 = vmatpush2.xpose.msra.mxu0 0.0
      %918 = vmatprep.subr.mxu0 0.0
      %919 = vmatpush2.xpose.msra.mxu0 0.0
      %920 = vmatprep.subr.mxu0 0.0
      %921 = vmatpush2.xpose.msra.mxu0 0.0
      %922 = vmatprep.subr.mxu0 0.0
      %923 = vmatpush2.xpose.msra.mxu0 0.0
      %924 = vmatprep.subr.mxu0 0.0
      %925 = vmatpush2.xpose.msra.mxu0 0.0
      %926 = vmatprep.subr.mxu0 0.0
      %927 = vmatpush2.xpose.msra.mxu0 0.0
      %928 = vmatprep.subr.mxu0 0.0
      %929 = vmatpush2.xpose.msra.mxu0 0.0
      %930 = vmatprep.mubr.f32.mxu0 0.0
      %931 = vmatmul.mubr.f32.gmra.mxu0 %v862
      %v932 = vpop.f32.mrf.mxu0
      %v933 = vadd.f32 0.0, %v932
      %v934 = vpop.f32.mrf.mxu0
      %935 = vdwg.mxu0
      %s936 = scalar_lea.vmem [#allocation2], 24
      %v937 = vld [vmem:[%s936] sm:$0xff]
      %v938 = vsel %vm269, %v933, -inf
      %939 = vmax.xlane.f32.xlu0 %v938
      %v940 = vpop.xlane.xlu0 %939
      %v941 = vmax.f32 %v937, %v940
      %v942 = vsub.f32 %v937, %v941
      %v943 = vmul.f32 %v942, 1.442695
      %v944 = vpow.pop %v943
      %946 = vset.pattern.permute.xlu0 0
      %947 = vperm.xlu0 %946, %v941
      %v948 = vpop.permute.xlu0 %947
      %v950 = vsub.f32 %v933, %v948
      %v951 = vmul.f32 %v950, 1.442695
      %v952 = vpow.pop %v951
      %s953 = scalar_lea.vmem [#allocation3], 24
      %v954 = vld [vmem:[%s953] sm:$0xff]
      %v955 = vmul.f32 %v944, %v954
      %v956 = vsel %vm269, %v952, 0.0
      %957 = vadd.xlane.f32.xlu0 %v956
      %v958 = vpop.xlane.xlu0 %957
      %v959 = vadd.f32 %v955, %v958
      %960 = vst.msk [vmem:[%s953] sm:$0xff] %vm368, %v959
      %962 = vrot.lane.b32.xlu0 %v855, 104
      %v963 = vpop.permute.xlu0 %962
      %v966 = vsel %vm269, %v952, 0
      %968 = vmatprep.subr.mxu0 0.0
      %969 = vmatpush1.msra.mxu0 0.0
      %970 = vmatprep.subr.mxu0 0.0
      %971 = vmatpush1.msra.mxu0 0.0
      %972 = vmatprep.subr.mxu0 0.0
      %973 = vmatpush1.msra.mxu0 0.0
      %974 = vmatprep.subr.mxu0 0.0
      %975 = vmatpush1.msra.mxu0 0.0
      %976 = vmatprep.subr.mxu0 0.0
      %977 = vmatpush1.msra.mxu0 0.0
      %978 = vmatprep.subr.mxu0 0.0
      %979 = vmatpush1.msra.mxu0 0.0
      %980 = vmatprep.subr.mxu0 0.0
      %981 = vmatpush1.msra.mxu0 0.0
      %982 = vmatprep.subr.mxu0 0.0
      %983 = vmatpush1.msra.mxu0 0.0
      %984 = vmatprep.subr.mxu0 0.0
      %985 = vmatpush1.msra.mxu0 0.0
      %986 = vmatprep.subr.mxu0 0.0
      %987 = vmatpush1.msra.mxu0 0.0
      %988 = vmatprep.subr.mxu0 0.0
      %989 = vmatpush1.msra.mxu0 0.0
      %990 = vmatprep.subr.mxu0 0.0
      %991 = vmatpush1.msra.mxu0 0.0
      %992 = vmatprep.subr.mxu0 0.0
      %993 = vmatpush1.msra.mxu0 0.0
      %994 = vmatprep.subr.mxu0 0.0
      %995 = vmatpush1.msra.mxu0 0.0
      %996 = vmatprep.subr.mxu0 0.0
      %997 = vmatpush1.msra.mxu0 0.0
      %998 = vmatprep.subr.mxu0 0.0
      %999 = vmatpush1.msra.mxu0 %v963
      %1000 = vmatprep.subr.mxu0 0.0
      %1001 = vmatpush2.msra.mxu0 0.0
      %1002 = vmatprep.subr.mxu0 0.0
      %1003 = vmatpush2.msra.mxu0 0.0
      %1004 = vmatprep.subr.mxu0 0.0
      %1005 = vmatpush2.msra.mxu0 0.0
      %1006 = vmatprep.subr.mxu0 0.0
      %1007 = vmatpush2.msra.mxu0 0.0
      %1008 = vmatprep.subr.mxu0 0.0
      %1009 = vmatpush2.msra.mxu0 0.0
      %1010 = vmatprep.subr.mxu0 0.0
      %1011 = vmatpush2.msra.mxu0 0.0
      %1012 = vmatprep.subr.mxu0 0.0
      %1013 = vmatpush2.msra.mxu0 0.0
      %1014 = vmatprep.subr.mxu0 0.0
      %1015 = vmatpush2.msra.mxu0 0.0
      %1016 = vmatprep.subr.mxu0 0.0
      %1017 = vmatpush2.msra.mxu0 0.0
      %1018 = vmatprep.subr.mxu0 0.0
      %1019 = vmatpush2.msra.mxu0 0.0
      %1020 = vmatprep.subr.mxu0 0.0
      %1021 = vmatpush2.msra.mxu0 0.0
      %1022 = vmatprep.subr.mxu0 0.0
      %1023 = vmatpush2.msra.mxu0 0.0
      %1024 = vmatprep.subr.mxu0 0.0
      %1025 = vmatpush2.msra.mxu0 0.0
      %1026 = vmatprep.subr.mxu0 0.0
      %1027 = vmatpush2.msra.mxu0 0.0
      %1028 = vmatprep.subr.mxu0 0.0
      %1029 = vmatpush2.msra.mxu0 0.0
      %1030 = vmatprep.subr.mxu0 0.0
      %1031 = vmatpush2.msra.mxu0 0.0
      %1032 = vmatprep.mubr.f32.mxu0 0.0
      %1033 = vmatmul.mubr.f32.gmra.mxu0 %v966
      %v1034 = vpop.f32.mrf.mxu0
      %v1035 = vadd.f32 0.0, %v1034
      %v1036 = vpop.f32.mrf.mxu0
      %1037 = vdwg.mxu0
      %v1038 = vld [vmem:[#allocation4] sm:$0xff]
      %1040 = vset.pattern.permute.xlu0 0
      %1041 = vperm.xlu0 %1040, %v944
      %v1042 = vpop.permute.xlu0 %1041
      %v1044 = vmul.f32 %v1042, %v1038
      %1046 = vrot.lane.b32.xlu0 %v1035, 24
      %v1047 = vpop.permute.xlu0 %1046
      %v1049 = vadd.f32 %v1044, %v1047
      %vm1050 = vcmask 261312
      %1051 = vst.msk [vmem:[#allocation4] sm:$0xff] %vm1050, %v1049
      %1052 = vst.msk [vmem:[%s936] sm:$0xff] %vm368, %v941
      // Predicated region
      $region37: #{multi_head_attention.4} parent=31 // pred_check
        %p1053 = pneg %p251
      $region38: #{multi_head_attention.4} parent=31 // pred_check_branch
        %1055 = sbr.rel (%p1053) target = $region40
      $region39: #{multi_head_attention.4} parent=31 // pred_region
        %v1056 = vld [vmem:[#allocation3] sm:$0xff]
        %v1057 = vrcp.pop %v1056
        %v1058 = vld [vmem:[#allocation4] sm:$0xff]
        %1060 = vset.pattern.permute.xlu0 0
        %1061 = vperm.xlu0 %1060, %v1057
        %v1062 = vpop.permute.xlu0 %1061
        %v1064 = vmul.f32 %v1058, %v1062
        %1065 = vst.msk [vmem:[#allocation4] sm:$0xff] %vm269, %v1064
        %v1066 = vld [vmem:[%s553] sm:$0xff]
        %v1067 = vrcp.pop %v1066
        %v1068 = vld [vmem:[#allocation4] sm:$0xff]
        %1070 = vset.pattern.permute.xlu0 0
        %1071 = vperm.xlu0 %1070, %v1067
        %v1072 = vpop.permute.xlu0 %1071
        %v1074 = vmul.f32 %v1068, %v1072
        %1075 = vst.msk [vmem:[#allocation4] sm:$0xff] %vm650, %v1074
        %v1076 = vld [vmem:[%s753] sm:$0xff]
        %v1077 = vrcp.pop %v1076
        %v1078 = vld [vmem:[#allocation4] sm:$0xff]
        %1080 = vset.pattern.permute.xlu0 0
        %1081 = vperm.xlu0 %1080, %v1077
        %v1082 = vpop.permute.xlu0 %1081
        %v1084 = vmul.f32 %v1078, %v1082
        %1085 = vst.msk [vmem:[#allocation4] sm:$0xff] %vm850, %v1084
        %v1086 = vld [vmem:[%s953] sm:$0xff]
        %v1087 = vrcp.pop %v1086
        %v1088 = vld [vmem:[#allocation4] sm:$0xff]
        %1090 = vset.pattern.permute.xlu0 0
        %1091 = vperm.xlu0 %1090, %v1087
        %v1092 = vpop.permute.xlu0 %1091
        %v1094 = vmul.f32 %v1088, %v1092
        %1095 = vst.msk [vmem:[#allocation4] sm:$0xff] %vm1050, %v1094
        %v1096 = vld [vmem:[#allocation4] sm:$0xff]
        %vm1097 = vcmask 261120
        %1098 = vst.msk [vmem:[%s249] sm:$0xff] %vm1097, %v1096
      $region40: #{multi_head_attention.4} parent=31 // pred_fallthru
        _
      %s1099 = sadd.s32 %s19, %s20
      %p1100 = scmp.lt.s32.totalorder %s1099, 1
      %s1101 = scalar_select %p1100, %s1099, 1
      %s1102 = smul.addr %s1101, 8
      %s1103 = scalar_lea.vmem %s3, %s1102
      // Predicated region
      $region41: #{multi_head_attention.4} parent=31 // pred_check
        %p1104 = pneg %p137
      $region42: #{multi_head_attention.4} parent=31 // pred_check_branch
        %1106 = sbr.rel (%p1104) target = $region44
      $region43: #{multi_head_attention.4} parent=31 // pred_region
        %s1107 = sadd.s32 %s19, %s20
      $region44: #{multi_head_attention.4} parent=31 // pred_fallthru
        _
    $region32: #{multi_head_attention.4} parent=5 // pred_fallthru
      _
    %p1108 = scmp.le.s32.totalorder 2, %s9
    // Predicated region
    $region45: #{multi_head_attention.4} parent=5 // pred_check
      %p1109 = pneg %p1108
    $region46: #{multi_head_attention.4} parent=5 // pred_check_branch
      %1111 = sbr.rel (%p1109) target = $region48
    $region47: #{multi_head_attention.4} parent=5 // pred_region
      %s1112 = ssub.s32 %s9, 2
      // Predicated region
      $region49: #{multi_head_attention.4} parent=47 // pred_check
        %p1113 = pneg %p143
      $region50: #{multi_head_attention.4} parent=47 // pred_check_branch
        %1115 = sbr.rel (%p1113) target = $region52
      $region51: #{multi_head_attention.4} parent=47 // pred_region
        %s1116 = sadd.s32 %s22, %s23
        %p1117 = scmp.lt.s32.totalorder %s1116, 1
        %s1118 = scalar_select %p1117, %s1116, 1
        %s1119 = smul.addr %s1118, 8
        %s1120 = scalar_lea.vmem %s3, %s1119
      $region52: #{multi_head_attention.4} parent=47 // pred_fallthru
        _
    $region48: #{multi_head_attention.4} parent=5 // pred_fallthru
      _
  $region6: #{multi_head_attention.4} parent=0 // loop_footer
    %s13 = sadd.s32 1, %s9
  $region7: #{multi_head_attention.4} parent=0 // loop_footer_branch
    %8 = sbr.rel target = $region3
  $region8: #{multi_head_attention.4} parent=0 // loop_exit
    _

</llo_original>
